<compile_context>
chip_gen: v7x
topology: tpu7x:2x2x1
jax: 0.10.0
libtpu: 0.0.40
codegen_flags: <defaults>
</compile_context>

<pallas_src>
import numpy as np
import jax
import jax.numpy as jnp
from jax.experimental import pallas as pl
from jax.experimental.pallas import tpu as pltpu


# ---------------------------------------------------------------------------
# Kernels: fused scores + normalization + attn @ V, all heads per step,
# online accumulation over the Lk grid axis.
# ---------------------------------------------------------------------------
def _attn_masked_kernel(q_ref, k_ref, v_ref, qb_ref, kb_ref, o_ref,
                        acc_ref, l_ref):
    # q_ref: (1, h, tq, d) bf16   k_ref/v_ref: (1, h, tk, d) bf16
    # qb_ref: (1, tq, 1) f32      kb_ref: (1, 1, tk) f32  (additive 0 / -1e9)
    # o_ref: (1, tq, h*d) bf16    acc_ref: (tq, h*d) f32  l_ref: (h, tq, 1) f32
    kk = pl.program_id(2)
    nk = pl.num_programs(2)

    @pl.when(kk == 0)
    def _():
        acc_ref[...] = jnp.zeros_like(acc_ref)
        l_ref[...] = jnp.zeros_like(l_ref)

    h, d = q_ref.shape[1], q_ref.shape[3]
    qb = qb_ref[0]                      # (tq, 1)
    kb = kb_ref[0]                      # (1, tk)

    pvs = []
    for hh in range(h):                 # h is small & static
        s = jax.lax.dot_general(q_ref[0, hh], k_ref[0, hh],
                                (((1,), (1,)), ((), ())),
                                preferred_element_type=jnp.float32)
        # Faithful to the PyTorch reference: clip(-10, 10) then exp; masking is
        # an additive -1e9 bias (exact 0 after exp) instead of an LqxLk multiply.
        s = jnp.clip(s, -10.0, 10.0) + qb + kb
        e = jnp.exp(s)
        l_ref[hh] += jnp.sum(e, axis=-1, keepdims=True)
        pvs.append(jnp.dot(e.astype(v_ref.dtype), v_ref[0, hh],
                           preferred_element_type=jnp.float32))
    acc_ref[...] += jnp.concatenate(pvs, axis=-1)

    @pl.when(kk == nk - 1)
    def _():
        outs = []
        for hh in range(h):
            inv = pl.reciprocal(l_ref[hh] + 1e-5, approx=True)   # (tq, 1)
            outs.append(acc_ref[:, hh * d:(hh + 1) * d] * inv)
        o_ref[0] = jnp.concatenate(outs, axis=-1).astype(o_ref.dtype)


def _attn_softmax_kernel(q_ref, k_ref, v_ref, o_ref, acc_ref, m_ref, l_ref):
    # Flash-style online softmax over the Lk grid axis, all heads per step.
    kk = pl.program_id(2)
    nk = pl.num_programs(2)

    @pl.when(kk == 0)
    def _():
        acc_ref[...] = jnp.zeros_like(acc_ref)
        m_ref[...] = jnp.full_like(m_ref, -jnp.inf)
        l_ref[...] = jnp.zeros_like(l_ref)

    h, tq, d = q_ref.shape[1], q_ref.shape[2], q_ref.shape[3]

    pvs, alphas = [], []
    for hh in range(h):
        s = jax.lax.dot_general(q_ref[0, hh], k_ref[0, hh],
                                (((1,), (1,)), ((), ())),
                                preferred_element_type=jnp.float32)
        m_prev = m_ref[hh]                                        # (tq, 1)
        m_new = jnp.maximum(m_prev, jnp.max(s, axis=-1, keepdims=True))
        alpha = jnp.exp(m_prev - m_new)
        e = jnp.exp(s - m_new)
        l_ref[hh] = alpha * l_ref[hh] + jnp.sum(e, axis=-1, keepdims=True)
        m_ref[hh] = m_new
        alphas.append(jnp.broadcast_to(alpha, (tq, d)))
        pvs.append(jnp.dot(e.astype(v_ref.dtype), v_ref[0, hh],
                           preferred_element_type=jnp.float32))
    acc_ref[...] = (jnp.concatenate(alphas, axis=-1) * acc_ref[...]
                    + jnp.concatenate(pvs, axis=-1))

    @pl.when(kk == nk - 1)
    def _():
        outs = []
        for hh in range(h):
            inv = pl.reciprocal(l_ref[hh], approx=True)
            outs.append(acc_ref[:, hh * d:(hh + 1) * d] * inv)
        o_ref[0] = jnp.concatenate(outs, axis=-1).astype(o_ref.dtype)


# ---------------------------------------------------------------------------
# VMEM budgeting & tile selection
# ---------------------------------------------------------------------------
def _round_up(x, m):
    return ((x + m - 1) // m) * m


def _vmem_budget():
    """Generation-aware VMEM budget: ~50 MiB on 64 MiB parts (v7x), ~100 MiB on
    128 MiB parts (v5e/v6e)."""
    try:
        cap = int(pltpu.get_tpu_info().vmem_capacity_bytes)
    except Exception:
        cap = 64 << 20                       # conservative (v7x) fallback
    return min(int(cap * 0.78), 100 << 20)


def _vmem_cost(h, d, tq, tk, cbytes, obytes):
    """Per-step VMEM estimate (double buffering counted once, temporaries and
    lane-padded scratch included)."""
    kv = 2 * 2 * h * tk * d * cbytes              # K + V, double-buffered
    qb = 2 * h * tq * d * cbytes                  # Q, double-buffered
    ob = 2 * tq * h * d * obytes                  # output (bf16), double-buffered
    bias = 2 * (tq * 128 + 8 * tk) * 4            # lane-padded bias blocks
    scr = tq * h * d * 4 + 2 * h * tq * 128 * 4   # acc + m + l (lane-padded)
    tmp = 4 * tq * tk * 4 + 3 * tq * h * d * 4    # s/e/e_bf16 + pv concat slack
    return kv + qb + ob + bias + scr + tmp


# ---------------------------------------------------------------------------
# pallas_call wrapper
# ---------------------------------------------------------------------------
def _fused_attention_pallas(q, k, v, q_bias=None, k_bias=None, *,
                            q_tile=None, kv_tile=None):
    """q: (B, h, Lq, d); k/v: (B, h, Lk, d) in compute dtype.
    q_bias: (B, Lq, 1) f32; k_bias: (B, 1, Lk) f32 (additive 0 / -1e9) or None.
    Returns (B, Lq, h*d) in compute dtype, heads concatenated on features."""
    B, h, Lq, d = q.shape
    Lk = k.shape[2]
    out_dtype = q.dtype
    cbytes = jnp.dtype(q.dtype).itemsize
    obytes = jnp.dtype(out_dtype).itemsize
    budget = _vmem_budget()

    # --- q tile (pad unaligned large Lq to a multiple of 128) ---
    if q_tile is not None:
        tq = int(q_tile)
        Lq_pad = _round_up(Lq, tq)
    elif Lq <= 512:
        tq, Lq_pad = Lq, Lq
    else:
        Lq_pad = _round_up(Lq, 128)
        tq = next(t for t in (512, 256, 128) if Lq_pad % t == 0)

    # --- kv tile: full Lk if it fits the VMEM budget, else tile + online norm ---
    if kv_tile is not None:
        tk = int(kv_tile)
        assert Lk % tk == 0, "kv_tile must divide Lk"
    else:
        k_cands = [Lk] + [t for t in (2048, 1024, 512, 256, 128)
                          if Lk % t == 0 and t < Lk]
        q_cands = [tq] + ([t for t in (256, 128) if t < tq and Lq_pad % t == 0]
                          if q_tile is None else [])
        tk = None
        for tq_c in q_cands:
            for tk_c in k_cands:
                if _vmem_cost(h, d, tq_c, tk_c, cbytes, obytes) <= budget:
                    tq, tk = tq_c, tk_c
                    break
            if tk is not None:
                break
        if tk is None:                       # nothing fits the model: smallest legal
            tq, tk = q_cands[-1], k_cands[-1]

    if Lq_pad != Lq:
        q = jnp.pad(q, ((0, 0), (0, 0), (0, Lq_pad - Lq), (0, 0)))
        if q_bias is not None:
            q_bias = jnp.pad(q_bias, ((0, 0), (0, Lq_pad - Lq), (0, 0)))

    grid = (B, Lq_pad // tq, Lk // tk)       # Lk (reduction) axis last

    q_spec = pl.BlockSpec((1, h, tq, d), lambda b, i, kk: (b, 0, i, 0))
    kv_spec = pl.BlockSpec((1, h, tk, d), lambda b, i, kk: (b, 0, kk, 0))
    # TODO(synk): optionally pipeline_mode=pl.Buffered(3) on K/V when Lq//tq<=2.
    o_spec = pl.BlockSpec((1, tq, h * d), lambda b, i, kk: (b, i, 0))
    out_shape = jax.ShapeDtypeStruct((B, Lq_pad, h * d), out_dtype)

    cparams = pltpu.CompilerParams(
        dimension_semantics=("parallel", "parallel", "arbitrary"),
        vmem_limit_bytes=int(budget))

    if q_bias is not None:
        kernel = _attn_masked_kernel
        in_specs = [q_spec, kv_spec, kv_spec,
                    pl.BlockSpec((1, tq, 1), lambda b, i, kk: (b, i, 0)),
                    pl.BlockSpec((1, 1, tk), lambda b, i, kk: (b, 0, kk))]
        args = (q, k, v, q_bias, k_bias)
        scratch = [pltpu.VMEM((tq, h * d), jnp.float32),    # acc
                   pltpu.VMEM((h, tq, 1), jnp.float32)]     # running denominator
    else:
        kernel = _attn_softmax_kernel
        in_specs = [q_spec, kv_spec, kv_spec]
        args = (q, k, v)
        scratch = [pltpu.VMEM((tq, h * d), jnp.float32),    # acc
                   pltpu.VMEM((h, tq, 1), jnp.float32),     # running max
                   pltpu.VMEM((h, tq, 1), jnp.float32)]     # running denominator

    out = pl.pallas_call(
        kernel,
        out_shape=out_shape,
        grid_spec=pltpu.PrefetchScalarGridSpec(
            num_scalar_prefetch=0, grid=grid,
            in_specs=in_specs, out_specs=o_spec, scratch_shapes=scratch),
        compiler_params=cparams,
    )(*args)
    return out if Lq_pad == Lq else out[:, :Lq, :]


# ---------------------------------------------------------------------------
# Module-equivalent wrapper
# ---------------------------------------------------------------------------
class MultiheadAttentionExpanded:
    """JAX/Pallas port of MultiheadAttentionExpanded (dot-product similarity family)."""

    # TODO(synk): store_qk / attention_maps analysis hooks are stateful bookkeeping
    # with no effect on the forward value and are not ported.

    def __init__(self, d, h, sim='dot', key=None, compute_dtype=jnp.bfloat16,
                 q_tile=None, kv_tile=None):
        assert sim in ['dot', 'scaled_dot', 'general_dot', 'concat_dot', 'additive']
        if sim in ('concat_dot', 'additive'):
            # TODO(synk): 'additive' (pairwise tanh-MLP scores) not ported;
            # 'concat_dot' raises in the reference PyTorch code as well.
            raise NotImplementedError(sim)
        self.d, self.h = d, h
        self.similarity = sim
        self.compute_dtype = compute_dtype
        self.scale = 1.0 / float(d) ** 0.5 if sim == 'scaled_dot' else 1.0
        self._q_tile, self._kv_tile = q_tile, kv_tile

        key = jax.random.PRNGKey(42) if key is None else key
        ks = jax.random.split(key, 9)
        lim = 1.0 / float(d) ** 0.5

        def u(k_, shp, l):
            return jax.random.uniform(k_, shp, jnp.float32, -l, l)

        # Per-head projection weights stacked over heads: (h, d, d) / (h, d).
        self.Wq, self.bq = u(ks[0], (h, d, d), lim), u(ks[1], (h, d), lim)
        self.Wk, self.bk = u(ks[2], (h, d, d), lim), u(ks[3], (h, d), lim)
        self.Wv, self.bv = u(ks[4], (h, d, d), lim), u(ks[5], (h, d), lim)
        limc = 1.0 / float(h * d) ** 0.5
        self.Wc, self.bc = u(ks[6], (h * d, d), limc), u(ks[7], (d,), limc)
        if sim == 'general_dot':
            a = jax.random.normal(ks[8], (d, d), jnp.float32)
            qmat, _ = jnp.linalg.qr(a)           # deterministic orthogonal init
            self.W_sim = qmat.astype(jnp.float32)
        else:
            self.W_sim = None

        # Fold the 'scaled_dot' scale and the 'general_dot' similarity matrix
        # into the Q projection at init (one-time weight transform): the kernel
        # never multiplies by scale and never sees an HxH operand.
        Wq_eff, bq_eff = self.Wq, self.bq
        if sim == 'scaled_dot':
            Wq_eff = Wq_eff * self.scale
            bq_eff = bq_eff * self.scale
        if sim == 'general_dot':
            Wq_eff = jnp.einsum('hde,ef->hdf', Wq_eff, self.W_sim)
            bq_eff = bq_eff @ self.W_sim
        self._Wq_eff, self._bq_eff = Wq_eff, bq_eff

    def __call__(self, queries, keys, values, qmasks=None, kmasks=None):
        B, Lq, d = queries.shape
        _, Lk, _ = keys.shape
        cdt = self.compute_dtype

        # Hoisted per-head projections: one big MXU-efficient matmul each,
        # laid out (B, h, L, d) so the kernel batches heads per grid step.
        Pq = (jnp.einsum('bld,hde->bhle', queries, self._Wq_eff)
              + self._bq_eff[None, :, None, :]).astype(cdt)
        Pk = (jnp.einsum('bld,hde->bhle', keys, self.Wk)
              + self.bk[None, :, None, :]).astype(cdt)
        Pv = (jnp.einsum('bld,hde->bhle', values, self.Wv)
              + self.bv[None, :, None, :]).astype(cdt)

        # Mask completion (same logic as the PyTorch forward), converted to
        # additive -1e9 biases shared across heads (no head replication in HBM).
        q_bias = k_bias = None
        if qmasks is not None or kmasks is not None:
            if qmasks is not None and kmasks is None:
                kmasks = jnp.ones((qmasks.shape[0], Lk), jnp.float32)
            elif qmasks is None and kmasks is not None:
                qmasks = jnp.ones((kmasks.shape[0], Lq), jnp.float32)
            qm = jnp.tile(qmasks.astype(jnp.float32), (B // qmasks.shape[0], 1))
            km = jnp.tile(kmasks.astype(jnp.float32), (B // kmasks.shape[0], 1))
            q_bias = ((qm - 1.0) * 1e9)[:, :, None]      # (B, Lq, 1)
            k_bias = ((km - 1.0) * 1e9)[:, None, :]      # (B, 1, Lk)

        cat = _fused_attention_pallas(Pq, Pk, Pv, q_bias, k_bias,
                                      q_tile=self._q_tile, kv_tile=self._kv_tile)
        # cat: (B, Lq, h*d) bf16, heads already concatenated along features.
        # TODO(synk): reference code does torch.cat(output, 1) which shape-mismatches
        # Linear(h*d, d) for h > 1; feature-axis concatenation is the evidently
        # intended semantics and is what is implemented here.
        return cat.astype(jnp.float32) @ self.Wc + self.bc


# ---------------------------------------------------------------------------
# Pure-JAX f32 reference (verification only; uses un-folded weights)
# ---------------------------------------------------------------------------
def _reference_forward(m, queries, keys, values, qmasks=None, kmasks=None):
    B, Lq, d = queries.shape
    _, Lk, _ = keys.shape
    Pq = jnp.einsum('bld,hde->hble', queries, m.Wq) + m.bq[:, None, None, :]
    Pk = jnp.einsum('bld,hde->hble', keys, m.Wk) + m.bk[:, None, None, :]
    Pv = jnp.einsum('bld,hde->hble', values, m.Wv) + m.bv[:, None, None, :]
    if m.similarity == 'general_dot':
        Pq = jnp.einsum('hblf,fe->hble', Pq, m.W_sim)
    s = jnp.einsum('hbqe,hbke->hbqk', Pq, Pk) * m.scale
    if qmasks is not None and kmasks is None:
        kmasks = jnp.ones((qmasks.shape[0], Lk), jnp.float32)
    if kmasks is not None and qmasks is None:
        qmasks = jnp.ones((kmasks.shape[0], Lq), jnp.float32)
    if qmasks is not None:
        qm = jnp.tile(qmasks.astype(jnp.float32), (B // qmasks.shape[0], 1))
        km = jnp.tile(kmasks.astype(jnp.float32), (B // kmasks.shape[0], 1))
        am = qm[None, :, :, None] * km[None, :, None, :]
        s = jnp.clip(s, -10.0, 10.0)
        e = jnp.exp(s) * am
        attn = e / (jnp.sum(e, axis=-1, keepdims=True) + 1e-5)
    else:
        attn = jax.nn.softmax(s, axis=-1)
    heads = jnp.einsum('hbqk,hbke->hbqe', attn, Pv)
    cat = jnp.transpose(heads, (1, 2, 0, 3)).reshape(B, Lq, m.h * d)
    return cat @ m.Wc + m.bc


# ---------------------------------------------------------------------------
if __name__ == "__main__":
    key = jax.random.PRNGKey(0)
    d, h = 32, 4
    B, Lq, Lk = 2, 8, 8
    k1, k2, k3, k4, k5, k6, k7, k8 = jax.random.split(key, 8)

    queries = 0.5 * jax.random.normal(k1, (B, Lq, d), jnp.float32)
    keys_in = 0.5 * jax.random.normal(k2, (B, Lk, d), jnp.float32)
    values = 0.5 * jax.random.normal(k3, (B, Lk, d), jnp.float32)
    qmasks = (jax.random.uniform(k4, (B, Lq)) > 0.3).astype(jnp.float32)
    kmasks = (jax.random.uniform(k5, (B, Lk)) > 0.3).astype(jnp.float32)

    mha_gen = MultiheadAttentionExpanded(d, h, sim='general_dot', key=k6)
    mha_sdp = MultiheadAttentionExpanded(d, h, sim='scaled_dot', key=k7)

    out_masked = mha_gen(queries, keys_in, values, qmasks=qmasks, kmasks=kmasks)
    out_plain = mha_gen(queries, keys_in, values)
    out_sdp = mha_sdp(queries, keys_in, values)

    # Larger case exercising the Lq / Lk tiled (online normalization) paths.
    B2, L2 = 2, 256
    q2 = 0.5 * jax.random.normal(k1, (B2, L2, d), jnp.float32)
    key2 = 0.5 * jax.random.normal(k2, (B2, L2, d), jnp.float32)
    v2 = 0.5 * jax.random.normal(k3, (B2, L2, d), jnp.float32)
    qm2 = (jax.random.uniform(k4, (B2, L2)) > 0.3).astype(jnp.float32)
    km2 = (jax.random.uniform(k5, (B2, L2)) > 0.3).astype(jnp.float32)
    mha_tiled = MultiheadAttentionExpanded(d, h, sim='scaled_dot', key=k8,
                                           q_tile=128, kv_tile=128)
    out_t_masked = mha_tiled(q2, key2, v2, qmasks=qm2, kmasks=km2)
    out_t_plain = mha_tiled(q2, key2, v2)

    jax.block_until_ready((out_masked, out_plain, out_sdp,
                           out_t_masked, out_t_plain))

    ref_masked = _reference_forward(mha_gen, queries, keys_in, values, qmasks, kmasks)
    ref_plain = _reference_forward(mha_gen, queries, keys_in, values)
    ref_sdp = _reference_forward(mha_sdp, queries, keys_in, values)
    ref_t_masked = _reference_forward(mha_tiled, q2, key2, v2, qm2, km2)
    ref_t_plain = _reference_forward(mha_tiled, q2, key2, v2)

    def _chk(a, b):
        assert np.allclose(np.asarray(a), np.asarray(b), atol=5e-2, rtol=5e-2)

    assert out_masked.shape == (B, Lq, d)
    assert out_t_masked.shape == (B2, L2, d)
    _chk(out_masked, ref_masked)
    _chk(out_plain, ref_plain)
    _chk(out_sdp, ref_sdp)
    _chk(out_t_masked, ref_t_masked)
    _chk(out_t_plain, ref_t_plain)
    print("KERNEL_OK")
</pallas_src>

<mosaic_0001>
module attributes {stable_mosaic.version = 11 : i64} {
  func.func @_attn_masked_kernel(%arg0: i32, %arg1: i32, %arg2: i32, %arg3: memref<1x4x8x32xbf16, #tpu.memory_space<vmem>>, %arg4: memref<1x4x8x32xbf16, #tpu.memory_space<vmem>>, %arg5: memref<1x4x8x32xbf16, #tpu.memory_space<vmem>>, %arg6: memref<1x8x1xf32, #tpu.memory_space<vmem>>, %arg7: memref<1x1x8xf32, #tpu.memory_space<vmem>>, %arg8: memref<1x8x128xbf16, #tpu.memory_space<vmem>>, %arg9: memref<8x128xf32, #tpu.memory_space<vmem>>, %arg10: memref<4x8x1xf32, #tpu.memory_space<vmem>>) attributes {dimension_semantics = [#tpu.dimension_semantics<parallel>, #tpu.dimension_semantics<parallel>, #tpu.dimension_semantics<arbitrary>], iteration_bounds = array<i64: 2, 1, 1>, scalar_prefetch = 0 : i64, scratch_operands = 2 : i64, tpu.core_type = #tpu.core_type<tc>, window_params = [{transform_indices = @transform_0, window_bounds = array<i64: 1, 4, 8, 32>}, {transform_indices = @transform_1, window_bounds = array<i64: 1, 4, 8, 32>}, {transform_indices = @transform_2, window_bounds = array<i64: 1, 4, 8, 32>}, {transform_indices = @transform_3, window_bounds = array<i64: 1, 8, 1>}, {transform_indices = @transform_4, window_bounds = array<i64: 1, 1, 8>}, {transform_indices = @transform_5, window_bounds = array<i64: 1, 8, 128>}]} {
    %c0_i32 = arith.constant 0 : i32
    %0 = arith.cmpi eq, %arg2, %c0_i32 : i32
    %1 = arith.extui %0 : i1 to i32
    %c0_i32_0 = arith.constant 0 : i32
    %2 = arith.cmpi ne, %1, %c0_i32_0 : i32
    scf.if %2 {
      %cst_100 = arith.constant 0.000000e+00 : f32
      %118 = vector.broadcast %cst_100 : f32 to vector<8x128xf32>
      %c0_101 = arith.constant 0 : index
      %c0_102 = arith.constant 0 : index
      %119 = vector.load %arg9[%c0_101, %c0_102] : memref<8x128xf32, #tpu.memory_space<vmem>>, vector<8x128xf32>
      tpu.vector_store %arg9[%c0_101, %c0_102], %118 {strides = array<i32>} : memref<8x128xf32, #tpu.memory_space<vmem>>, vector<8x128xf32>,
      %cst_103 = arith.constant 0.000000e+00 : f32
      %120 = vector.broadcast %cst_103 : f32 to vector<4x8x1xf32>
      %c0_104 = arith.constant 0 : index
      %c0_105 = arith.constant 0 : index
      %c0_106 = arith.constant 0 : index
      %121 = vector.load %arg10[%c0_104, %c0_105, %c0_106] : memref<4x8x1xf32, #tpu.memory_space<vmem>>, vector<4x8x1xf32>
      tpu.vector_store %arg10[%c0_104, %c0_105, %c0_106], %120 {strides = array<i32>} : memref<4x8x1xf32, #tpu.memory_space<vmem>>, vector<4x8x1xf32>,
    } else {
    }
    %c0 = arith.constant 0 : index
    %c0_1 = arith.constant 0 : index
    %c0_2 = arith.constant 0 : index
    %3 = vector.load %arg6[%c0, %c0_1, %c0_2] : memref<1x8x1xf32, #tpu.memory_space<vmem>>, vector<1x8x1xf32>
    %4 = vector.shape_cast %3 : vector<1x8x1xf32> to vector<8x1xf32>
    %c0_3 = arith.constant 0 : index
    %c0_4 = arith.constant 0 : index
    %c0_5 = arith.constant 0 : index
    %5 = vector.load %arg7[%c0_3, %c0_4, %c0_5] : memref<1x1x8xf32, #tpu.memory_space<vmem>>, vector<1x1x8xf32>
    %6 = vector.shape_cast %5 : vector<1x1x8xf32> to vector<1x8xf32>
    %c0_6 = arith.constant 0 : index
    %c0_7 = arith.constant 0 : index
    %c0_8 = arith.constant 0 : index
    %c0_9 = arith.constant 0 : index
    %7 = vector.load %arg3[%c0_6, %c0_7, %c0_8, %c0_9] : memref<1x4x8x32xbf16, #tpu.memory_space<vmem>>, vector<1x1x8x32xbf16>
    %8 = vector.shape_cast %7 : vector<1x1x8x32xbf16> to vector<8x32xbf16>
    %c0_10 = arith.constant 0 : index
    %c0_11 = arith.constant 0 : index
    %c0_12 = arith.constant 0 : index
    %c0_13 = arith.constant 0 : index
    %9 = vector.load %arg4[%c0_10, %c0_11, %c0_12, %c0_13] : memref<1x4x8x32xbf16, #tpu.memory_space<vmem>>, vector<1x1x8x32xbf16>
    %10 = vector.shape_cast %9 : vector<1x1x8x32xbf16> to vector<8x32xbf16>
    %cst = arith.constant dense<0.000000e+00> : vector<8x8xf32>
    %11 = tpu.matmul %8, %10, %cst {dimension_numbers = #tpu.dot_dimension_numbers<[1], [1], [0], [0], [0, 0, 1, 0], [], []>} : vector<8x32xbf16>, vector<8x32xbf16>, vector<8x8xf32> -> vector<8x8xf32>
    %cst_14 = arith.constant -1.000000e+01 : f32
    %cst_15 = arith.constant 1.000000e+01 : f32
    %12 = vector.broadcast %cst_14 : f32 to vector<8x8xf32>
    %13 = arith.maximumf %12, %11 : vector<8x8xf32>
    %14 = vector.broadcast %cst_15 : f32 to vector<8x8xf32>
    %15 = arith.minimumf %14, %13 : vector<8x8xf32>
    %16 = vector.broadcast %4 : vector<8x1xf32> to vector<8x8xf32>
    %17 = arith.addf %15, %16 : vector<8x8xf32>
    %18 = vector.broadcast %6 : vector<1x8xf32> to vector<8x8xf32>
    %19 = arith.addf %17, %18 : vector<8x8xf32>
    %20 = math.exp %19 : vector<8x8xf32>
    %c0_16 = arith.constant 0 : index
    %c0_17 = arith.constant 0 : index
    %c0_18 = arith.constant 0 : index
    %21 = vector.load %arg10[%c0_16, %c0_17, %c0_18] : memref<4x8x1xf32, #tpu.memory_space<vmem>>, vector<1x8x1xf32>
    %22 = vector.shape_cast %21 : vector<1x8x1xf32> to vector<8x1xf32>
    %cst_19 = arith.constant dense<0.000000e+00> : vector<8xf32>
    %23 = vector.multi_reduction <add>, %20, %cst_19 [1] : vector<8x8xf32> to vector<8xf32>
    %24 = vector.shape_cast %23 : vector<8xf32> to vector<8x1xf32>
    %25 = arith.addf %22, %24 : vector<8x1xf32>
    %c0_20 = arith.constant 0 : index
    %c0_21 = arith.constant 0 : index
    %c0_22 = arith.constant 0 : index
    %26 = vector.load %arg10[%c0_20, %c0_21, %c0_22] : memref<4x8x1xf32, #tpu.memory_space<vmem>>, vector<1x8x1xf32>
    %27 = vector.shape_cast %26 : vector<1x8x1xf32> to vector<8x1xf32>
    %28 = vector.shape_cast %25 : vector<8x1xf32> to vector<1x8x1xf32>
    tpu.vector_store %arg10[%c0_20, %c0_21, %c0_22], %28 {strides = array<i32>} : memref<4x8x1xf32, #tpu.memory_space<vmem>>, vector<1x8x1xf32>,
    %29 = arith.truncf %20 : vector<8x8xf32> to vector<8x8xbf16>
    %c0_23 = arith.constant 0 : index
    %c0_24 = arith.constant 0 : index
    %c0_25 = arith.constant 0 : index
    %c0_26 = arith.constant 0 : index
    %30 = vector.load %arg5[%c0_23, %c0_24, %c0_25, %c0_26] : memref<1x4x8x32xbf16, #tpu.memory_space<vmem>>, vector<1x1x8x32xbf16>
    %31 = vector.shape_cast %30 : vector<1x1x8x32xbf16> to vector<8x32xbf16>
    %cst_27 = arith.constant dense<0.000000e+00> : vector<8x32xf32>
    %32 = tpu.matmul %29, %31, %cst_27 {dimension_numbers = #tpu.dot_dimension_numbers<[1], [0], [0], [1], [0, 0, 1, 1], [], []>} : vector<8x8xbf16>, vector<8x32xbf16>, vector<8x32xf32> -> vector<8x32xf32>
    %c0_28 = arith.constant 0 : index
    %c1 = arith.constant 1 : index
    %c0_29 = arith.constant 0 : index
    %c0_30 = arith.constant 0 : index
    %33 = vector.load %arg3[%c0_28, %c1, %c0_29, %c0_30] : memref<1x4x8x32xbf16, #tpu.memory_space<vmem>>, vector<1x1x8x32xbf16>
    %34 = vector.shape_cast %33 : vector<1x1x8x32xbf16> to vector<8x32xbf16>
    %c0_31 = arith.constant 0 : index
    %c1_32 = arith.constant 1 : index
    %c0_33 = arith.constant 0 : index
    %c0_34 = arith.constant 0 : index
    %35 = vector.load %arg4[%c0_31, %c1_32, %c0_33, %c0_34] : memref<1x4x8x32xbf16, #tpu.memory_space<vmem>>, vector<1x1x8x32xbf16>
    %36 = vector.shape_cast %35 : vector<1x1x8x32xbf16> to vector<8x32xbf16>
    %cst_35 = arith.constant dense<0.000000e+00> : vector<8x8xf32>
    %37 = tpu.matmul %34, %36, %cst_35 {dimension_numbers = #tpu.dot_dimension_numbers<[1], [1], [0], [0], [0, 0, 1, 0], [], []>} : vector<8x32xbf16>, vector<8x32xbf16>, vector<8x8xf32> -> vector<8x8xf32>
    %cst_36 = arith.constant -1.000000e+01 : f32
    %cst_37 = arith.constant 1.000000e+01 : f32
    %38 = vector.broadcast %cst_36 : f32 to vector<8x8xf32>
    %39 = arith.maximumf %38, %37 : vector<8x8xf32>
    %40 = vector.broadcast %cst_37 : f32 to vector<8x8xf32>
    %41 = arith.minimumf %40, %39 : vector<8x8xf32>
    %42 = vector.broadcast %4 : vector<8x1xf32> to vector<8x8xf32>
    %43 = arith.addf %41, %42 : vector<8x8xf32>
    %44 = vector.broadcast %6 : vector<1x8xf32> to vector<8x8xf32>
    %45 = arith.addf %43, %44 : vector<8x8xf32>
    %46 = math.exp %45 : vector<8x8xf32>
    %c1_38 = arith.constant 1 : index
    %c0_39 = arith.constant 0 : index
    %c0_40 = arith.constant 0 : index
    %47 = vector.load %arg10[%c1_38, %c0_39, %c0_40] : memref<4x8x1xf32, #tpu.memory_space<vmem>>, vector<1x8x1xf32>
    %48 = vector.shape_cast %47 : vector<1x8x1xf32> to vector<8x1xf32>
    %cst_41 = arith.constant dense<0.000000e+00> : vector<8xf32>
    %49 = vector.multi_reduction <add>, %46, %cst_41 [1] : vector<8x8xf32> to vector<8xf32>
    %50 = vector.shape_cast %49 : vector<8xf32> to vector<8x1xf32>
    %51 = arith.addf %48, %50 : vector<8x1xf32>
    %c1_42 = arith.constant 1 : index
    %c0_43 = arith.constant 0 : index
    %c0_44 = arith.constant 0 : index
    %52 = vector.load %arg10[%c1_42, %c0_43, %c0_44] : memref<4x8x1xf32, #tpu.memory_space<vmem>>, vector<1x8x1xf32>
    %53 = vector.shape_cast %52 : vector<1x8x1xf32> to vector<8x1xf32>
    %54 = vector.shape_cast %51 : vector<8x1xf32> to vector<1x8x1xf32>
    tpu.vector_store %arg10[%c1_42, %c0_43, %c0_44], %54 {strides = array<i32>} : memref<4x8x1xf32, #tpu.memory_space<vmem>>, vector<1x8x1xf32>,
    %55 = arith.truncf %46 : vector<8x8xf32> to vector<8x8xbf16>
    %c0_45 = arith.constant 0 : index
    %c1_46 = arith.constant 1 : index
    %c0_47 = arith.constant 0 : index
    %c0_48 = arith.constant 0 : index
    %56 = vector.load %arg5[%c0_45, %c1_46, %c0_47, %c0_48] : memref<1x4x8x32xbf16, #tpu.memory_space<vmem>>, vector<1x1x8x32xbf16>
    %57 = vector.shape_cast %56 : vector<1x1x8x32xbf16> to vector<8x32xbf16>
    %cst_49 = arith.constant dense<0.000000e+00> : vector<8x32xf32>
    %58 = tpu.matmul %55, %57, %cst_49 {dimension_numbers = #tpu.dot_dimension_numbers<[1], [0], [0], [1], [0, 0, 1, 1], [], []>} : vector<8x8xbf16>, vector<8x32xbf16>, vector<8x32xf32> -> vector<8x32xf32>
    %c0_50 = arith.constant 0 : index
    %c2 = arith.constant 2 : index
    %c0_51 = arith.constant 0 : index
    %c0_52 = arith.constant 0 : index
    %59 = vector.load %arg3[%c0_50, %c2, %c0_51, %c0_52] : memref<1x4x8x32xbf16, #tpu.memory_space<vmem>>, vector<1x1x8x32xbf16>
    %60 = vector.shape_cast %59 : vector<1x1x8x32xbf16> to vector<8x32xbf16>
    %c0_53 = arith.constant 0 : index
    %c2_54 = arith.constant 2 : index
    %c0_55 = arith.constant 0 : index
    %c0_56 = arith.constant 0 : index
    %61 = vector.load %arg4[%c0_53, %c2_54, %c0_55, %c0_56] : memref<1x4x8x32xbf16, #tpu.memory_space<vmem>>, vector<1x1x8x32xbf16>
    %62 = vector.shape_cast %61 : vector<1x1x8x32xbf16> to vector<8x32xbf16>
    %cst_57 = arith.constant dense<0.000000e+00> : vector<8x8xf32>
    %63 = tpu.matmul %60, %62, %cst_57 {dimension_numbers = #tpu.dot_dimension_numbers<[1], [1], [0], [0], [0, 0, 1, 0], [], []>} : vector<8x32xbf16>, vector<8x32xbf16>, vector<8x8xf32> -> vector<8x8xf32>
    %cst_58 = arith.constant -1.000000e+01 : f32
    %cst_59 = arith.constant 1.000000e+01 : f32
    %64 = vector.broadcast %cst_58 : f32 to vector<8x8xf32>
    %65 = arith.maximumf %64, %63 : vector<8x8xf32>
    %66 = vector.broadcast %cst_59 : f32 to vector<8x8xf32>
    %67 = arith.minimumf %66, %65 : vector<8x8xf32>
    %68 = vector.broadcast %4 : vector<8x1xf32> to vector<8x8xf32>
    %69 = arith.addf %67, %68 : vector<8x8xf32>
    %70 = vector.broadcast %6 : vector<1x8xf32> to vector<8x8xf32>
    %71 = arith.addf %69, %70 : vector<8x8xf32>
    %72 = math.exp %71 : vector<8x8xf32>
    %c2_60 = arith.constant 2 : index
    %c0_61 = arith.constant 0 : index
    %c0_62 = arith.constant 0 : index
    %73 = vector.load %arg10[%c2_60, %c0_61, %c0_62] : memref<4x8x1xf32, #tpu.memory_space<vmem>>, vector<1x8x1xf32>
    %74 = vector.shape_cast %73 : vector<1x8x1xf32> to vector<8x1xf32>
    %cst_63 = arith.constant dense<0.000000e+00> : vector<8xf32>
    %75 = vector.multi_reduction <add>, %72, %cst_63 [1] : vector<8x8xf32> to vector<8xf32>
    %76 = vector.shape_cast %75 : vector<8xf32> to vector<8x1xf32>
    %77 = arith.addf %74, %76 : vector<8x1xf32>
    %c2_64 = arith.constant 2 : index
    %c0_65 = arith.constant 0 : index
    %c0_66 = arith.constant 0 : index
    %78 = vector.load %arg10[%c2_64, %c0_65, %c0_66] : memref<4x8x1xf32, #tpu.memory_space<vmem>>, vector<1x8x1xf32>
    %79 = vector.shape_cast %78 : vector<1x8x1xf32> to vector<8x1xf32>
    %80 = vector.shape_cast %77 : vector<8x1xf32> to vector<1x8x1xf32>
    tpu.vector_store %arg10[%c2_64, %c0_65, %c0_66], %80 {strides = array<i32>} : memref<4x8x1xf32, #tpu.memory_space<vmem>>, vector<1x8x1xf32>,
    %81 = arith.truncf %72 : vector<8x8xf32> to vector<8x8xbf16>
    %c0_67 = arith.constant 0 : index
    %c2_68 = arith.constant 2 : index
    %c0_69 = arith.constant 0 : index
    %c0_70 = arith.constant 0 : index
    %82 = vector.load %arg5[%c0_67, %c2_68, %c0_69, %c0_70] : memref<1x4x8x32xbf16, #tpu.memory_space<vmem>>, vector<1x1x8x32xbf16>
    %83 = vector.shape_cast %82 : vector<1x1x8x32xbf16> to vector<8x32xbf16>
    %cst_71 = arith.constant dense<0.000000e+00> : vector<8x32xf32>
    %84 = tpu.matmul %81, %83, %cst_71 {dimension_numbers = #tpu.dot_dimension_numbers<[1], [0], [0], [1], [0, 0, 1, 1], [], []>} : vector<8x8xbf16>, vector<8x32xbf16>, vector<8x32xf32> -> vector<8x32xf32>
    %c0_72 = arith.constant 0 : index
    %c3 = arith.constant 3 : index
    %c0_73 = arith.constant 0 : index
    %c0_74 = arith.constant 0 : index
    %85 = vector.load %arg3[%c0_72, %c3, %c0_73, %c0_74] : memref<1x4x8x32xbf16, #tpu.memory_space<vmem>>, vector<1x1x8x32xbf16>
    %86 = vector.shape_cast %85 : vector<1x1x8x32xbf16> to vector<8x32xbf16>
    %c0_75 = arith.constant 0 : index
    %c3_76 = arith.constant 3 : index
    %c0_77 = arith.constant 0 : index
    %c0_78 = arith.constant 0 : index
    %87 = vector.load %arg4[%c0_75, %c3_76, %c0_77, %c0_78] : memref<1x4x8x32xbf16, #tpu.memory_space<vmem>>, vector<1x1x8x32xbf16>
    %88 = vector.shape_cast %87 : vector<1x1x8x32xbf16> to vector<8x32xbf16>
    %cst_79 = arith.constant dense<0.000000e+00> : vector<8x8xf32>
    %89 = tpu.matmul %86, %88, %cst_79 {dimension_numbers = #tpu.dot_dimension_numbers<[1], [1], [0], [0], [0, 0, 1, 0], [], []>} : vector<8x32xbf16>, vector<8x32xbf16>, vector<8x8xf32> -> vector<8x8xf32>
    %cst_80 = arith.constant -1.000000e+01 : f32
    %cst_81 = arith.constant 1.000000e+01 : f32
    %90 = vector.broadcast %cst_80 : f32 to vector<8x8xf32>
    %91 = arith.maximumf %90, %89 : vector<8x8xf32>
    %92 = vector.broadcast %cst_81 : f32 to vector<8x8xf32>
    %93 = arith.minimumf %92, %91 : vector<8x8xf32>
    %94 = vector.broadcast %4 : vector<8x1xf32> to vector<8x8xf32>
    %95 = arith.addf %93, %94 : vector<8x8xf32>
    %96 = vector.broadcast %6 : vector<1x8xf32> to vector<8x8xf32>
    %97 = arith.addf %95, %96 : vector<8x8xf32>
    %98 = math.exp %97 : vector<8x8xf32>
    %c3_82 = arith.constant 3 : index
    %c0_83 = arith.constant 0 : index
    %c0_84 = arith.constant 0 : index
    %99 = vector.load %arg10[%c3_82, %c0_83, %c0_84] : memref<4x8x1xf32, #tpu.memory_space<vmem>>, vector<1x8x1xf32>
    %100 = vector.shape_cast %99 : vector<1x8x1xf32> to vector<8x1xf32>
    %cst_85 = arith.constant dense<0.000000e+00> : vector<8xf32>
    %101 = vector.multi_reduction <add>, %98, %cst_85 [1] : vector<8x8xf32> to vector<8xf32>
    %102 = vector.shape_cast %101 : vector<8xf32> to vector<8x1xf32>
    %103 = arith.addf %100, %102 : vector<8x1xf32>
    %c3_86 = arith.constant 3 : index
    %c0_87 = arith.constant 0 : index
    %c0_88 = arith.constant 0 : index
    %104 = vector.load %arg10[%c3_86, %c0_87, %c0_88] : memref<4x8x1xf32, #tpu.memory_space<vmem>>, vector<1x8x1xf32>
    %105 = vector.shape_cast %104 : vector<1x8x1xf32> to vector<8x1xf32>
    %106 = vector.shape_cast %103 : vector<8x1xf32> to vector<1x8x1xf32>
    tpu.vector_store %arg10[%c3_86, %c0_87, %c0_88], %106 {strides = array<i32>} : memref<4x8x1xf32, #tpu.memory_space<vmem>>, vector<1x8x1xf32>,
    %107 = arith.truncf %98 : vector<8x8xf32> to vector<8x8xbf16>
    %c0_89 = arith.constant 0 : index
    %c3_90 = arith.constant 3 : index
    %c0_91 = arith.constant 0 : index
    %c0_92 = arith.constant 0 : index
    %108 = vector.load %arg5[%c0_89, %c3_90, %c0_91, %c0_92] : memref<1x4x8x32xbf16, #tpu.memory_space<vmem>>, vector<1x1x8x32xbf16>
    %109 = vector.shape_cast %108 : vector<1x1x8x32xbf16> to vector<8x32xbf16>
    %cst_93 = arith.constant dense<0.000000e+00> : vector<8x32xf32>
    %110 = tpu.matmul %107, %109, %cst_93 {dimension_numbers = #tpu.dot_dimension_numbers<[1], [0], [0], [1], [0, 0, 1, 1], [], []>} : vector<8x8xbf16>, vector<8x32xbf16>, vector<8x32xf32> -> vector<8x32xf32>
    %c0_94 = arith.constant 0 : index
    %c0_95 = arith.constant 0 : index
    %111 = vector.load %arg9[%c0_94, %c0_95] : memref<8x128xf32, #tpu.memory_space<vmem>>, vector<8x128xf32>
    %112 = tpu.concatenate %32, %58, %84, %110 in 1 : vector<8x32xf32>, vector<8x32xf32>, vector<8x32xf32>, vector<8x32xf32> -> vector<8x128xf32>
    %113 = arith.addf %111, %112 : vector<8x128xf32>
    %c0_96 = arith.constant 0 : index
    %c0_97 = arith.constant 0 : index
    %114 = vector.load %arg9[%c0_96, %c0_97] : memref<8x128xf32, #tpu.memory_space<vmem>>, vector<8x128xf32>
    tpu.vector_store %arg9[%c0_96, %c0_97], %113 {strides = array<i32>} : memref<8x128xf32, #tpu.memory_space<vmem>>, vector<8x128xf32>,
    %c0_i32_98 = arith.constant 0 : i32
    %115 = arith.cmpi eq, %arg2, %c0_i32_98 : i32
    %116 = arith.extui %115 : i1 to i32
    %c0_i32_99 = arith.constant 0 : i32
    %117 = arith.cmpi ne, %116, %c0_i32_99 : i32
    scf.if %117 {
      %c0_100 = arith.constant 0 : index
      %c0_101 = arith.constant 0 : index
      %c0_102 = arith.constant 0 : index
      %118 = vector.load %arg10[%c0_100, %c0_101, %c0_102] : memref<4x8x1xf32, #tpu.memory_space<vmem>>, vector<1x8x1xf32>
      %119 = vector.shape_cast %118 : vector<1x8x1xf32> to vector<8x1xf32>
      %cst_103 = arith.constant 9.99999974E-6 : f32
      %120 = vector.broadcast %cst_103 : f32 to vector<8x1xf32>
      %121 = arith.addf %119, %120 : vector<8x1xf32>
      %122 = tpu.reciprocal %121 {approx = true} : vector<8x1xf32> -> vector<8x1xf32>
      %c0_104 = arith.constant 0 : index
      %c0_105 = arith.constant 0 : index
      %123 = vector.load %arg9[%c0_104, %c0_105] : memref<8x128xf32, #tpu.memory_space<vmem>>, vector<8x32xf32>
      %124 = vector.broadcast %122 : vector<8x1xf32> to vector<8x32xf32>
      %125 = arith.mulf %123, %124 : vector<8x32xf32>
      %c1_106 = arith.constant 1 : index
      %c0_107 = arith.constant 0 : index
      %c0_108 = arith.constant 0 : index
      %126 = vector.load %arg10[%c1_106, %c0_107, %c0_108] : memref<4x8x1xf32, #tpu.memory_space<vmem>>, vector<1x8x1xf32>
      %127 = vector.shape_cast %126 : vector<1x8x1xf32> to vector<8x1xf32>
      %cst_109 = arith.constant 9.99999974E-6 : f32
      %128 = vector.broadcast %cst_109 : f32 to vector<8x1xf32>
      %129 = arith.addf %127, %128 : vector<8x1xf32>
      %130 = tpu.reciprocal %129 {approx = true} : vector<8x1xf32> -> vector<8x1xf32>
      %c0_110 = arith.constant 0 : index
      %c32 = arith.constant 32 : index
      %131 = vector.load %arg9[%c0_110, %c32] : memref<8x128xf32, #tpu.memory_space<vmem>>, vector<8x32xf32>
      %132 = vector.broadcast %130 : vector<8x1xf32> to vector<8x32xf32>
      %133 = arith.mulf %131, %132 : vector<8x32xf32>
      %c2_111 = arith.constant 2 : index
      %c0_112 = arith.constant 0 : index
      %c0_113 = arith.constant 0 : index
      %134 = vector.load %arg10[%c2_111, %c0_112, %c0_113] : memref<4x8x1xf32, #tpu.memory_space<vmem>>, vector<1x8x1xf32>
      %135 = vector.shape_cast %134 : vector<1x8x1xf32> to vector<8x1xf32>
      %cst_114 = arith.constant 9.99999974E-6 : f32
      %136 = vector.broadcast %cst_114 : f32 to vector<8x1xf32>
      %137 = arith.addf %135, %136 : vector<8x1xf32>
      %138 = tpu.reciprocal %137 {approx = true} : vector<8x1xf32> -> vector<8x1xf32>
      %c0_115 = arith.constant 0 : index
      %c64 = arith.constant 64 : index
      %139 = vector.load %arg9[%c0_115, %c64] : memref<8x128xf32, #tpu.memory_space<vmem>>, vector<8x32xf32>
      %140 = vector.broadcast %138 : vector<8x1xf32> to vector<8x32xf32>
      %141 = arith.mulf %139, %140 : vector<8x32xf32>
      %c3_116 = arith.constant 3 : index
      %c0_117 = arith.constant 0 : index
      %c0_118 = arith.constant 0 : index
      %142 = vector.load %arg10[%c3_116, %c0_117, %c0_118] : memref<4x8x1xf32, #tpu.memory_space<vmem>>, vector<1x8x1xf32>
      %143 = vector.shape_cast %142 : vector<1x8x1xf32> to vector<8x1xf32>
      %cst_119 = arith.constant 9.99999974E-6 : f32
      %144 = vector.broadcast %cst_119 : f32 to vector<8x1xf32>
      %145 = arith.addf %143, %144 : vector<8x1xf32>
      %146 = tpu.reciprocal %145 {approx = true} : vector<8x1xf32> -> vector<8x1xf32>
      %c0_120 = arith.constant 0 : index
      %c96 = arith.constant 96 : index
      %147 = vector.load %arg9[%c0_120, %c96] : memref<8x128xf32, #tpu.memory_space<vmem>>, vector<8x32xf32>
      %148 = vector.broadcast %146 : vector<8x1xf32> to vector<8x32xf32>
      %149 = arith.mulf %147, %148 : vector<8x32xf32>
      %150 = tpu.concatenate %125, %133, %141, %149 in 1 : vector<8x32xf32>, vector<8x32xf32>, vector<8x32xf32>, vector<8x32xf32> -> vector<8x128xf32>
      %151 = arith.truncf %150 : vector<8x128xf32> to vector<8x128xbf16>
      %c0_121 = arith.constant 0 : index
      %c0_122 = arith.constant 0 : index
      %c0_123 = arith.constant 0 : index
      %152 = vector.load %arg8[%c0_121, %c0_122, %c0_123] : memref<1x8x128xbf16, #tpu.memory_space<vmem>>, vector<1x8x128xbf16>
      %153 = vector.shape_cast %152 : vector<1x8x128xbf16> to vector<8x128xbf16>
      %154 = vector.shape_cast %151 : vector<8x128xbf16> to vector<1x8x128xbf16>
      tpu.vector_store %arg8[%c0_121, %c0_122, %c0_123], %154 {strides = array<i32>} : memref<1x8x128xbf16, #tpu.memory_space<vmem>>, vector<1x8x128xbf16>,
    } else {
    }
    return
  }
  func.func @transform_0(%arg0: i32, %arg1: i32, %arg2: i32) -> (i32, i32, i32, i32) {
    %c0_i32 = arith.constant 0 : i32
    %c0_i32_0 = arith.constant 0 : i32
    %c0_i32_1 = arith.constant 0 : i32
    return %arg0, %c0_i32, %arg1, %c0_i32_0 : i32, i32, i32, i32
  }
  func.func @transform_1(%arg0: i32, %arg1: i32, %arg2: i32) -> (i32, i32, i32, i32) {
    %c0_i32 = arith.constant 0 : i32
    %c0_i32_0 = arith.constant 0 : i32
    %c0_i32_1 = arith.constant 0 : i32
    return %arg0, %c0_i32, %arg2, %c0_i32_0 : i32, i32, i32, i32
  }
  func.func @transform_2(%arg0: i32, %arg1: i32, %arg2: i32) -> (i32, i32, i32, i32) {
    %c0_i32 = arith.constant 0 : i32
    %c0_i32_0 = arith.constant 0 : i32
    %c0_i32_1 = arith.constant 0 : i32
    return %arg0, %c0_i32, %arg2, %c0_i32_0 : i32, i32, i32, i32
  }
  func.func @transform_3(%arg0: i32, %arg1: i32, %arg2: i32) -> (i32, i32, i32) {
    %c0_i32 = arith.constant 0 : i32
    %c0_i32_0 = arith.constant 0 : i32
    return %arg0, %arg1, %c0_i32 : i32, i32, i32
  }
  func.func @transform_4(%arg0: i32, %arg1: i32, %arg2: i32) -> (i32, i32, i32) {
    %c0_i32 = arith.constant 0 : i32
    %c0_i32_0 = arith.constant 0 : i32
    return %arg0, %c0_i32, %arg2 : i32, i32, i32
  }
  func.func @transform_5(%arg0: i32, %arg1: i32, %arg2: i32) -> (i32, i32, i32) {
    %c0_i32 = arith.constant 0 : i32
    %c0_i32_0 = arith.constant 0 : i32
    return %arg0, %arg1, %c0_i32 : i32, i32, i32
  }
}

</mosaic_0001>

<llo_original>
// kernel: tpu_custom_call.1
$region0: #{tpu_custom_call.1}
  #allocation0 [shape = 'u32[]', space=smem, size = 0x4, offset = 0x4, fixed_abs, tag = 'smem constant byte address 0x4 - core index']
  #allocation1 [shape = 'u32[144,128]{1,0:T(1,128)}', space=vmem, size = 0x12000, scoped, tag = 'internal scratch']
  #allocation2 [shape = 'f32[8,128]{1,0:T(8,128)}', space=vmem, size = 0x1000, scoped, tag = 'scratch operand']
  #allocation3 [shape = 'f32[4,8,1]{2,1,0:T(8,128)}', space=vmem, size = 0x4000, scoped, tag = 'scratch operand']
  %s0 = inlined_call_operand.hbm [shape: bf16[2,4,8,32], index: 0, kind: input, shape index: {}]
  %s1 = inlined_call_operand.hbm [shape: bf16[2,4,8,32], index: 1, kind: input, shape index: {}]
  %s2 = inlined_call_operand.hbm [shape: bf16[2,4,8,32], index: 2, kind: input, shape index: {}]
  %s3 = inlined_call_operand.vmem [shape: f32[2,8,1], index: 3, kind: input, shape index: {}]
  %s4 = inlined_call_operand.vmem [shape: f32[2,1,8], index: 4, kind: input, shape index: {}]
  %s5 = inlined_call_operand.hbm [shape: bf16[2,8,128], index: 5, kind: output, shape index: {}]
  %s6 = sld [smem:[#allocation0]]
  $region73: #{tpu_custom_call.1} parent=0
    _
  %s8 = ssub.s32 1, %s6
  %s9 = scalar_select 0, %s8, %s6
  $region1: #{tpu_custom_call.1} parent=0
    #allocation4 [shape = 'u8[16384]{0}', space=vmem, size = 0x4000, scoped, tag = 'input window, operand 0']
    #allocation5 [shape = 's32[2]{0}', space=sflag, size = 0x8, scoped, tag = 'scoped memory for tpu_custom_call.1']
    #allocation6 [shape = 's32[2]{0}', space=sflag, size = 0x8, scoped, tag = 'scoped memory for tpu_custom_call.1']
    #allocation7 [shape = 'u8[16384]{0}', space=vmem, size = 0x4000, scoped, tag = 'input window, operand 1']
    #allocation8 [shape = 's32[2]{0}', space=sflag, size = 0x8, scoped, tag = 'scoped memory for tpu_custom_call.1']
    #allocation9 [shape = 'u8[16384]{0}', space=vmem, size = 0x4000, scoped, tag = 'input window, operand 2']
    #allocation10 [shape = 'u8[4096]{0}', space=vmem, size = 0x1000, scoped, tag = 'output window, operand 0']
    %10 = vsyncpa [#allocation5], 0
    %s11 = scalar_lea.sflag [#allocation5], 1
    %12 = vsyncpa %s11, 0
    %13 = vsyncpa [#allocation8], 0
    %s14 = scalar_lea.sflag [#allocation8], 1
    %15 = vsyncpa %s14, 0
    %16 = vsyncpa [#allocation6], 0
    %s17 = scalar_lea.sflag [#allocation6], 1
    %18 = vsyncpa %s17, 0
    loop: start=0, step=1, limit=4
    $region2: #{tpu_custom_call.1} parent=1 // loop_pre_header
      _
    $region3: #{tpu_custom_call.1} parent=1 // loop_header
      %s20 = sphi 0, %s24
      %p21 = scmp.ge.s32.totalorder %s20, 4
      %s27 = sphi 0, %s46
      %s28 = sphi 0, %s42
      %s29 = sphi 0, %s38
      %s30 = sphi 0, %s27
      %s31 = sphi 0, %s28
      %s32 = sphi 0, %s29
      %s33 = sphi 0, %s30
      %s34 = sphi 0, %s31
      %s35 = sphi 0, %s32
      %s51 = sphi 0, %s53
      %s54 = sphi 0, %s51
      %s55 = sphi 0, %s54
      %s71 = sphi 0, %s55
      %s79 = sphi 0, %s81
      %s82 = sphi 0, %s79
      %s83 = sphi 0, %s82
      %s99 = sphi 0, %s83
      %s107 = sphi 0, %s109
      %s110 = sphi 0, %s107
      %s111 = sphi 0, %s110
      %s127 = sphi 0, %s111
      %s135 = sphi 0, %s137
      %s138 = sphi 0, %s135
      %s139 = sphi 0, %s138
      %s155 = sphi 0, %s139
      %s163 = sphi 0, %s165
      %s166 = sphi 0, %s163
      %s167 = sphi 0, %s166
      %s183 = sphi 0, %s167
      %s191 = sphi 0, %s193
      %s194 = sphi 0, %s191
      %s195 = sphi 0, %s194
      %s211 = sphi 0, %s195
    $region4: #{tpu_custom_call.1} parent=1 // loop_header_branch
      %23 = sbr.rel (%p21) target = $region8
    $region5: #{tpu_custom_call.1} parent=1 // loop_body
      %s25 = ssub.s32 %s20, 1
      %s26 = ssub.s32 %s20, 2
      %s36 = sadd.s32 1, %s29
      %p37 = scmp.ge.s32.totalorder %s36, 1
      %s38 = scalar_select %p37, 0, %s36
      %s39 = sadd.s32 1, %s28
      %s40 = scalar_select %p37, %s39, %s28
      %p41 = scmp.ge.s32.totalorder %s40, 1
      %s42 = scalar_select %p41, 0, %s40
      %s43 = sadd.s32 1, %s27
      %s44 = scalar_select %p41, %s43, %s27
      %p45 = scmp.ge.s32.totalorder %s44, 2
      %s46 = scalar_select %p45, 0, %s44
      %s47 = ssub.s32 %s27, %s46
      %s48 = ssub.s32 %s28, %s42
      %s49 = sor.u32 %s47, %s48
      %p50 = scmp.eq.s32.totalorder %s49, 0
      %s52 = sadd.s32 %s51, 1
      %s53 = scalar_select %p50, %s51, %s52
      %p56 = pneg %p50
      %p57 = scmp.eq.s32.totalorder %s20, 1
      %p58 = por %p56, %p57
      %p59 = scmp.ne.s32.totalorder %s51, %s54
      %p60 = scmp.eq.s32.totalorder %s20, 0
      %p61 = por %p59, %p60
      %p62 = scmp.ne.s32.totalorder %s51, %s54
      %p63 = scmp.eq.s32.totalorder %s25, 1
      %p64 = por %p62, %p63
      %p65 = scmp.ne.s32.totalorder %s54, %s55
      %p66 = scmp.eq.s32.totalorder %s25, 0
      %p67 = por %p65, %p66
      %p68 = scmp.ne.s32.totalorder %s54, %s55
      %p69 = scmp.eq.s32.totalorder %s26, 1
      %p70 = por %p68, %p69
      %p72 = scmp.ne.s32.totalorder %s55, %s71
      %p73 = scmp.eq.s32.totalorder %s26, 0
      %p74 = por %p72, %p73
      %s75 = ssub.s32 %s27, %s46
      %s76 = ssub.s32 %s29, %s38
      %s77 = sor.u32 %s75, %s76
      %p78 = scmp.eq.s32.totalorder %s77, 0
      %s80 = sadd.s32 %s79, 1
      %s81 = scalar_select %p78, %s79, %s80
      %p84 = pneg %p78
      %p85 = scmp.eq.s32.totalorder %s20, 1
      %p86 = por %p84, %p85
      %p87 = scmp.ne.s32.totalorder %s79, %s82
      %p88 = scmp.eq.s32.totalorder %s20, 0
      %p89 = por %p87, %p88
      %p90 = scmp.ne.s32.totalorder %s79, %s82
      %p91 = scmp.eq.s32.totalorder %s25, 1
      %p92 = por %p90, %p91
      %p93 = scmp.ne.s32.totalorder %s82, %s83
      %p94 = scmp.eq.s32.totalorder %s25, 0
      %p95 = por %p93, %p94
      %p96 = scmp.ne.s32.totalorder %s82, %s83
      %p97 = scmp.eq.s32.totalorder %s26, 1
      %p98 = por %p96, %p97
      %p100 = scmp.ne.s32.totalorder %s83, %s99
      %p101 = scmp.eq.s32.totalorder %s26, 0
      %p102 = por %p100, %p101
      %s103 = ssub.s32 %s27, %s46
      %s104 = ssub.s32 %s29, %s38
      %s105 = sor.u32 %s103, %s104
      %p106 = scmp.eq.s32.totalorder %s105, 0
      %s108 = sadd.s32 %s107, 1
      %s109 = scalar_select %p106, %s107, %s108
      %p112 = pneg %p106
      %p113 = scmp.eq.s32.totalorder %s20, 1
      %p114 = por %p112, %p113
      %p115 = scmp.ne.s32.totalorder %s107, %s110
      %p116 = scmp.eq.s32.totalorder %s20, 0
      %p117 = por %p115, %p116
      %p118 = scmp.ne.s32.totalorder %s107, %s110
      %p119 = scmp.eq.s32.totalorder %s25, 1
      %p120 = por %p118, %p119
      %p121 = scmp.ne.s32.totalorder %s110, %s111
      %p122 = scmp.eq.s32.totalorder %s25, 0
      %p123 = por %p121, %p122
      %p124 = scmp.ne.s32.totalorder %s110, %s111
      %p125 = scmp.eq.s32.totalorder %s26, 1
      %p126 = por %p124, %p125
      %p128 = scmp.ne.s32.totalorder %s111, %s127
      %p129 = scmp.eq.s32.totalorder %s26, 0
      %p130 = por %p128, %p129
      %s131 = ssub.s32 %s27, %s46
      %s132 = ssub.s32 %s28, %s42
      %s133 = sor.u32 %s131, %s132
      %p134 = scmp.eq.s32.totalorder %s133, 0
      %s136 = sadd.s32 %s135, 1
      %s137 = scalar_select %p134, %s135, %s136
      %p140 = pneg %p134
      %p141 = scmp.eq.s32.totalorder %s20, 1
      %p142 = por %p140, %p141
      %p143 = scmp.ne.s32.totalorder %s135, %s138
      %p144 = scmp.eq.s32.totalorder %s20, 0
      %p145 = por %p143, %p144
      %p146 = scmp.ne.s32.totalorder %s135, %s138
      %p147 = scmp.eq.s32.totalorder %s25, 1
      %p148 = por %p146, %p147
      %p149 = scmp.ne.s32.totalorder %s138, %s139
      %p150 = scmp.eq.s32.totalorder %s25, 0
      %p151 = por %p149, %p150
      %p152 = scmp.ne.s32.totalorder %s138, %s139
      %p153 = scmp.eq.s32.totalorder %s26, 1
      %p154 = por %p152, %p153
      %p156 = scmp.ne.s32.totalorder %s139, %s155
      %p157 = scmp.eq.s32.totalorder %s26, 0
      %p158 = por %p156, %p157
      %s159 = ssub.s32 %s27, %s46
      %s160 = ssub.s32 %s29, %s38
      %s161 = sor.u32 %s159, %s160
      %p162 = scmp.eq.s32.totalorder %s161, 0
      %s164 = sadd.s32 %s163, 1
      %s165 = scalar_select %p162, %s163, %s164
      %p168 = pneg %p162
      %p169 = scmp.eq.s32.totalorder %s20, 1
      %p170 = por %p168, %p169
      %p171 = scmp.ne.s32.totalorder %s163, %s166
      %p172 = scmp.eq.s32.totalorder %s20, 0
      %p173 = por %p171, %p172
      %p174 = scmp.ne.s32.totalorder %s163, %s166
      %p175 = scmp.eq.s32.totalorder %s25, 1
      %p176 = por %p174, %p175
      %p177 = scmp.ne.s32.totalorder %s166, %s167
      %p178 = scmp.eq.s32.totalorder %s25, 0
      %p179 = por %p177, %p178
      %p180 = scmp.ne.s32.totalorder %s166, %s167
      %p181 = scmp.eq.s32.totalorder %s26, 1
      %p182 = por %p180, %p181
      %p184 = scmp.ne.s32.totalorder %s167, %s183
      %p185 = scmp.eq.s32.totalorder %s26, 0
      %p186 = por %p184, %p185
      %s187 = ssub.s32 %s27, %s46
      %s188 = ssub.s32 %s28, %s42
      %s189 = sor.u32 %s187, %s188
      %p190 = scmp.eq.s32.totalorder %s189, 0
      %s192 = sadd.s32 %s191, 1
      %s193 = scalar_select %p190, %s191, %s192
      %p196 = pneg %p190
      %p197 = scmp.eq.s32.totalorder %s20, 1
      %p198 = por %p196, %p197
      %p199 = scmp.ne.s32.totalorder %s191, %s194
      %p200 = scmp.eq.s32.totalorder %s20, 0
      %p201 = por %p199, %p200
      %p202 = scmp.ne.s32.totalorder %s191, %s194
      %p203 = scmp.eq.s32.totalorder %s25, 1
      %p204 = por %p202, %p203
      %p205 = scmp.ne.s32.totalorder %s194, %s195
      %p206 = scmp.eq.s32.totalorder %s25, 0
      %p207 = por %p205, %p206
      %p208 = scmp.ne.s32.totalorder %s194, %s195
      %p209 = scmp.eq.s32.totalorder %s26, 1
      %p210 = por %p208, %p209
      %p212 = scmp.ne.s32.totalorder %s195, %s211
      %p213 = scmp.eq.s32.totalorder %s26, 0
      %p214 = por %p212, %p213
      %p215 = scmp.le.s32.totalorder 1, %s20
      %p216 = scmp.lt.s32.totalorder %s20, 3
      %p217 = pnand %p215, %p216
      %p218 = pneg %p217
      // Predicated region
      $region9: #{tpu_custom_call.1} parent=5 // pred_check
        _
      $region10: #{tpu_custom_call.1} parent=5 // pred_check_branch
        %220 = sbr.rel (%p217) target = $region12
      $region11: #{tpu_custom_call.1} parent=5 // pred_region
        %s221 = ssub.s32 %s20, 1
      $region12: #{tpu_custom_call.1} parent=5 // pred_fallthru
        _
      %p222 = scmp.lt.s32.totalorder %s20, 2
      // Predicated region
      $region13: #{tpu_custom_call.1} parent=5 // pred_check
        %p223 = pneg %p222
      $region14: #{tpu_custom_call.1} parent=5 // pred_check_branch
        %225 = sbr.rel (%p223) target = $region16
      $region15: #{tpu_custom_call.1} parent=5 // pred_region
        // Predicated region
        $region17: #{tpu_custom_call.1} parent=15 // pred_check
          %p226 = pneg %p61
        $region18: #{tpu_custom_call.1} parent=15 // pred_check_branch
          %228 = sbr.rel (%p226) target = $region20
        $region19: #{tpu_custom_call.1} parent=15 // pred_region
          %s229 = sand.u32 %s51, 1
          %s230 = scalar_lea.sflag [#allocation5], %s229
          %s231 = sand.u32 %s51, 1
          %s232 = smul.addr %s231, 16
          %s233 = scalar_lea.vmem [#allocation4], %s232
          %s235 = ssub.s32 256, 256
          %236 = vsyncadd %s230, %s235
          %s237 = smul.addr %s27, 4
          %s238 = sadd.s32 %s28, %s237
          %s239 = smul.addr %s238, 64
          %s240 = scalar_lea.hbm %s0, %s239
          %s241 = sshll.u32 %s233, 4
          %s242 = int_to_ptr.vmem [resolvable:$true] %s241
          %247 = dma.hbm_to_vmem [thread:$0]  %s240, 256, %s242, %s230, 64, 64, 4
        $region20: #{tpu_custom_call.1} parent=15 // pred_fallthru
          _
        // Predicated region
        $region21: #{tpu_custom_call.1} parent=15 // pred_check
          %p248 = pneg %p89
        $region22: #{tpu_custom_call.1} parent=15 // pred_check_branch
          %250 = sbr.rel (%p248) target = $region24
        $region23: #{tpu_custom_call.1} parent=15 // pred_region
          %s251 = sand.u32 %s20, 1
          %s252 = scalar_lea.sflag [#allocation8], %s251
          %s253 = sand.u32 %s79, 1
          %s254 = smul.addr %s253, 16
          %s255 = scalar_lea.vmem [#allocation7], %s254
          %s257 = ssub.s32 256, 256
          %258 = vsyncadd %s252, %s257
          %s259 = smul.addr %s27, 4
          %s260 = sadd.s32 %s29, %s259
          %s261 = smul.addr %s260, 64
          %s262 = scalar_lea.hbm %s1, %s261
          %s263 = sshll.u32 %s255, 4
          %s264 = int_to_ptr.vmem [resolvable:$true] %s263
          %269 = dma.hbm_to_vmem [thread:$0]  %s262, 256, %s264, %s252, 64, 64, 4
        $region24: #{tpu_custom_call.1} parent=15 // pred_fallthru
          _
        // Predicated region
        $region25: #{tpu_custom_call.1} parent=15 // pred_check
          %p270 = pneg %p117
        $region26: #{tpu_custom_call.1} parent=15 // pred_check_branch
          %272 = sbr.rel (%p270) target = $region28
        $region27: #{tpu_custom_call.1} parent=15 // pred_region
          %s273 = sand.u32 %s20, 1
          %s274 = scalar_lea.sflag [#allocation8], %s273
          %s275 = sand.u32 %s107, 1
          %s276 = smul.addr %s275, 16
          %s277 = scalar_lea.vmem [#allocation9], %s276
          %s279 = ssub.s32 256, 256
          %280 = vsyncadd %s274, %s279
          %s281 = smul.addr %s27, 4
          %s282 = sadd.s32 %s29, %s281
          %s283 = smul.addr %s282, 64
          %s284 = scalar_lea.hbm %s2, %s283
          %s285 = sshll.u32 %s277, 4
          %s286 = int_to_ptr.vmem [resolvable:$true] %s285
          %291 = dma.hbm_to_vmem [thread:$0]  %s284, 256, %s286, %s274, 64, 64, 4
        $region28: #{tpu_custom_call.1} parent=15 // pred_fallthru
          _
        // Predicated region
        $region29: #{tpu_custom_call.1} parent=15 // pred_check
          %p292 = pneg %p145
        $region30: #{tpu_custom_call.1} parent=15 // pred_check_branch
          %294 = sbr.rel (%p292) target = $region32
        $region31: #{tpu_custom_call.1} parent=15 // pred_region
          %p295 = scmp.lt.s32.totalorder %s27, 1
          %s296 = scalar_select %p295, %s27, 1
          %p297 = scmp.lt.s32.totalorder %s28, 0
          %s298 = scalar_select %p297, %s28, 0
          %s299 = sadd.s32 %s298, %s296
          %s300 = smul.addr %s299, 8
          %s301 = scalar_lea.vmem %s3, %s300
        $region32: #{tpu_custom_call.1} parent=15 // pred_fallthru
          _
        // Predicated region
        $region33: #{tpu_custom_call.1} parent=15 // pred_check
          %p302 = pneg %p173
        $region34: #{tpu_custom_call.1} parent=15 // pred_check_branch
          %304 = sbr.rel (%p302) target = $region36
        $region35: #{tpu_custom_call.1} parent=15 // pred_region
          %p305 = scmp.lt.s32.totalorder %s27, 1
          %s306 = scalar_select %p305, %s27, 1
          %p307 = scmp.lt.s32.totalorder %s29, 0
          %s308 = scalar_select %p307, %s29, 0
          %s309 = sadd.s32 %s308, %s306
          %s310 = scalar_lea.vmem %s4, %s309
        $region36: #{tpu_custom_call.1} parent=15 // pred_fallthru
          _
      $region16: #{tpu_custom_call.1} parent=5 // pred_fallthru
        _
      %p311 = scmp.le.s32.totalorder 1, %s20
      %p312 = scmp.lt.s32.totalorder %s20, 3
      %p313 = pnand %p311, %p312
      %p314 = pneg %p313
      // Predicated region
      $region37: #{tpu_custom_call.1} parent=5 // pred_check
        _
      $region38: #{tpu_custom_call.1} parent=5 // pred_check_branch
        %316 = sbr.rel (%p313) target = $region40
      $region39: #{tpu_custom_call.1} parent=5 // pred_region
        %s317 = ssub.s32 %s20, 1
        %s318 = sand.u32 %s54, 1
        %s319 = scalar_lea.sflag [#allocation5], %s318
        %s320 = sand.u32 %s54, 1
        %s321 = smul.addr %s320, 16
        %s322 = scalar_lea.vmem [#allocation4], %s321
        // Predicated region
        $region41: #{tpu_custom_call.1} parent=39 // pred_check
          %p323 = pneg %p67
        $region42: #{tpu_custom_call.1} parent=39 // pred_check_branch
          %325 = sbr.rel (%p323) target = $region44
        $region43: #{tpu_custom_call.1} parent=39 // pred_region
          %326 = dma.done %s319, 256
        $region44: #{tpu_custom_call.1} parent=39 // pred_fallthru
          _
        %s327 = sand.u32 %s25, 1
        %s328 = scalar_lea.sflag [#allocation8], %s327
        %s329 = sand.u32 %s82, 1
        %s330 = smul.addr %s329, 16
        %s331 = scalar_lea.vmem [#allocation7], %s330
        // Predicated region
        $region45: #{tpu_custom_call.1} parent=39 // pred_check
          %p332 = pneg %p95
        $region46: #{tpu_custom_call.1} parent=39 // pred_check_branch
          %334 = sbr.rel (%p332) target = $region48
        $region47: #{tpu_custom_call.1} parent=39 // pred_region
          %335 = dma.done %s328, 256
        $region48: #{tpu_custom_call.1} parent=39 // pred_fallthru
          _
        %s336 = sand.u32 %s25, 1
        %s337 = scalar_lea.sflag [#allocation8], %s336
        %s338 = sand.u32 %s110, 1
        %s339 = smul.addr %s338, 16
        %s340 = scalar_lea.vmem [#allocation9], %s339
        // Predicated region
        $region49: #{tpu_custom_call.1} parent=39 // pred_check
          %p341 = pneg %p123
        $region50: #{tpu_custom_call.1} parent=39 // pred_check_branch
          %343 = sbr.rel (%p341) target = $region52
        $region51: #{tpu_custom_call.1} parent=39 // pred_region
          %344 = dma.done %s337, 256
        $region52: #{tpu_custom_call.1} parent=39 // pred_fallthru
          _
        %s345 = sand.u32 %s54, 1
        %s346 = scalar_lea.sflag [#allocation5], %s345
        %s347 = sand.u32 %s54, 1
        %s348 = smul.addr %s347, 16
        %s349 = scalar_lea.vmem [#allocation4], %s348
        %p350 = pneg %p67
        %p351 = pneg %p64
        %s352 = sand.u32 %s25, 1
        %s353 = scalar_lea.sflag [#allocation8], %s352
        %s354 = sand.u32 %s82, 1
        %s355 = smul.addr %s354, 16
        %s356 = scalar_lea.vmem [#allocation7], %s355
        %p357 = pneg %p95
        %p358 = pneg %p92
        %s359 = sand.u32 %s25, 1
        %s360 = scalar_lea.sflag [#allocation8], %s359
        %s361 = sand.u32 %s110, 1
        %s362 = smul.addr %s361, 16
        %s363 = scalar_lea.vmem [#allocation9], %s362
        %p364 = pneg %p123
        %p365 = pneg %p120
        %p366 = scmp.lt.s32.totalorder %s30, 1
        %s367 = scalar_select %p366, %s30, 1
        %p368 = scmp.lt.s32.totalorder %s31, 0
        %s369 = scalar_select %p368, %s31, 0
        %s370 = sadd.s32 %s369, %s367
        %s371 = smul.addr %s370, 8
        %s372 = scalar_lea.vmem %s3, %s371
        %p373 = pneg %p151
        %p374 = pneg %p148
        %p375 = scmp.lt.s32.totalorder %s30, 1
        %s376 = scalar_select %p375, %s30, 1
        %p377 = scmp.lt.s32.totalorder %s32, 0
        %s378 = scalar_select %p377, %s32, 0
        %s379 = sadd.s32 %s378, %s376
        %s380 = scalar_lea.vmem %s4, %s379
        %p381 = pneg %p179
        %p382 = pneg %p176
        %p383 = pneg %p207
        %p384 = pneg %p204
        %s385 = sand.u32 %s194, 1
        %s386 = scalar_lea.sflag [#allocation6], %s385
        %s387 = sand.u32 %s194, 1
        %s388 = smul.addr %s387, 4
        %s389 = scalar_lea.vmem [#allocation10], %s388
        %p390 = scmp.lt.s32.totalorder %s30, 1
        %s391 = scalar_select %p390, %s30, 1
        %p392 = scmp.lt.s32.totalorder %s31, 0
        %s393 = scalar_select %p392, %s31, 0
        %s394 = sadd.s32 %s393, %s391
        %s395 = smul.addr %s394, 8
        %s396 = scalar_lea.vmem %s3, %s395
        %p397 = scmp.lt.s32.totalorder %s30, 1
        %s398 = scalar_select %p397, %s30, 1
        %p399 = scmp.lt.s32.totalorder %s32, 0
        %s400 = scalar_select %p399, %s32, 0
        %s401 = sadd.s32 %s400, %s398
        %s402 = scalar_lea.vmem %s4, %s401
        %p404 = scmp.eq.s32.totalorder %s32, 0
        // Predicated region
        $region53: #{tpu_custom_call.1} parent=39 // pred_check
          %p405 = pneg %p404
        $region54: #{tpu_custom_call.1} parent=39 // pred_check_branch
          %407 = sbr.rel (%p405) target = $region56
        $region55: #{tpu_custom_call.1} parent=39 // pred_region
          %408 = vst [vmem:[#allocation2] sm:$0xff] 0.0
          %vm409 = vcmask 7168
          %410 = vst.msk [vmem:[#allocation3] sm:$0xff] %vm409, 0.0
          %411 = vst.msk [vmem:[#allocation3 + $0x8] sm:$0xff] %vm409, 0.0
          %412 = vst.msk [vmem:[#allocation3 + $0x10] sm:$0xff] %vm409, 0.0
          %413 = vst.msk [vmem:[#allocation3 + $0x18] sm:$0xff] %vm409, 0.0
        $region56: #{tpu_custom_call.1} parent=39 // pred_fallthru
          _
        %v414 = vld [vmem:[%s396] sm:$0xff]
        %v415 = vld [vmem:[%s402] sm:$0x1]
        %v416 = vld [vmem:[%s322] sm:$0xf]
        %v417 = vld [vmem:[%s331] sm:$0xf]
        %vm418 = vcmask 261120
        %v420 = vsel %vm418, %v416, 0
        %v423 = vsel %vm418, %v417, 0
        %425 = vmatprep.subr.bf16.mxu0 0
        %426 = vmatpush1.bf16.xpose.msra.mxu0 %v423
        %427 = vmatprep.subr.bf16.mxu0 0
        %428 = vmatpush1.bf16.xpose.msra.mxu0 0
        %429 = vmatprep.subr.bf16.mxu0 0
        %430 = vmatpush1.bf16.xpose.msra.mxu0 0
        %431 = vmatprep.subr.bf16.mxu0 0
        %432 = vmatpush1.bf16.xpose.msra.mxu0 0
        %433 = vmatprep.subr.bf16.mxu0 0
        %434 = vmatpush1.bf16.xpose.msra.mxu0 0
        %435 = vmatprep.subr.bf16.mxu0 0
        %436 = vmatpush1.bf16.xpose.msra.mxu0 0
        %437 = vmatprep.subr.bf16.mxu0 0
        %438 = vmatpush1.bf16.xpose.msra.mxu0 0
        %439 = vmatprep.subr.bf16.mxu0 0
        %440 = vmatpush1.bf16.xpose.msra.mxu0 0
        %441 = vmatprep.subr.bf16.mxu0 0
        %442 = vmatpush1.bf16.xpose.msra.mxu0 0
        %443 = vmatprep.subr.bf16.mxu0 0
        %444 = vmatpush1.bf16.xpose.msra.mxu0 0
        %445 = vmatprep.subr.bf16.mxu0 0
        %446 = vmatpush1.bf16.xpose.msra.mxu0 0
        %447 = vmatprep.subr.bf16.mxu0 0
        %448 = vmatpush1.bf16.xpose.msra.mxu0 0
        %449 = vmatprep.subr.bf16.mxu0 0
        %450 = vmatpush1.bf16.xpose.msra.mxu0 0
        %451 = vmatprep.subr.bf16.mxu0 0
        %452 = vmatpush1.bf16.xpose.msra.mxu0 0
        %453 = vmatprep.subr.bf16.mxu0 0
        %454 = vmatpush1.bf16.xpose.msra.mxu0 0
        %455 = vmatprep.subr.bf16.mxu0 0
        %456 = vmatpush1.bf16.xpose.msra.mxu0 0
        %457 = vmatprep.mubr.bf16.mxu0 0
        %458 = vmatmul.mubr.bf16.gmra.mrb[0].mxu0 %v420
        %v459 = vpop.f32.mrb[0].mxu0
        %v460 = vadd.f32 0.0, %v459
        %v461 = vpop.f32.mrb[0].mxu0
        %v462 = vpop.f32.mrb[0].mxu0
        %v463 = vpop.f32.mrb[0].mxu0
        %464 = vdwg.mxu0
        %v465 = vmax.f32 %v460, -10.0
        %v466 = vmin.f32 %v465, 10.0
        %468 = vset.pattern.permute.xlu0 0
        %469 = vperm.xlu0 %468, %v414
        %v470 = vpop.permute.xlu0 %469
        %v472 = vadd.f32 %v466, %v470
        %v474 = vlaneseq
        %v475 = vshrl.u32 %v474, 7
        %v476 = vsub.s32 0, %v475
        %v477 = vrot.slane %v415, %v476
        %v479 = vadd.f32 %v472, %v477
        %v480 = vmul.f32 %v479, 1.442695
        %v481 = vpow.pop %v480
        %v482 = vld [vmem:[#allocation3] sm:$0xff]
        %vm483 = vcmask 64512
        %v484 = vsel %vm483, %v481, 0.0
        %485 = vadd.xlane.f32.xlu0 %v484
        %v486 = vpop.xlane.xlu0 %485
        %v487 = vadd.f32 %v482, %v486
        %vm488 = vcmask 7168
        %489 = vst.msk [vmem:[#allocation3] sm:$0xff] %vm488, %v487
        %v490 = vpack.c.bf16 %v481, %v481
        %v491 = vld [vmem:[%s340] sm:$0xf]
        %v493 = vsel %vm483, %v490, 0
        %vm495 = vcmask 1043456
        %v497 = vsel %vm495, %v491, 0
        %499 = vmatprep.subr.bf16.mxu0 0
        %500 = vmatpush1.bf16.msra.mxu0 %v497
        %501 = vmatprep.subr.bf16.mxu0 0
        %502 = vmatpush1.bf16.msra.mxu0 0
        %503 = vmatprep.subr.bf16.mxu0 0
        %504 = vmatpush1.bf16.msra.mxu0 0
        %505 = vmatprep.subr.bf16.mxu0 0
        %506 = vmatpush1.bf16.msra.mxu0 0
        %507 = vmatprep.subr.bf16.mxu0 0
        %508 = vmatpush1.bf16.msra.mxu0 0
        %509 = vmatprep.subr.bf16.mxu0 0
        %510 = vmatpush1.bf16.msra.mxu0 0
        %511 = vmatprep.subr.bf16.mxu0 0
        %512 = vmatpush1.bf16.msra.mxu0 0
        %513 = vmatprep.subr.bf16.mxu0 0
        %514 = vmatpush1.bf16.msra.mxu0 0
        %515 = vmatprep.subr.bf16.mxu0 0
        %516 = vmatpush1.bf16.msra.mxu0 0
        %517 = vmatprep.subr.bf16.mxu0 0
        %518 = vmatpush1.bf16.msra.mxu0 0
        %519 = vmatprep.subr.bf16.mxu0 0
        %520 = vmatpush1.bf16.msra.mxu0 0
        %521 = vmatprep.subr.bf16.mxu0 0
        %522 = vmatpush1.bf16.msra.mxu0 0
        %523 = vmatprep.subr.bf16.mxu0 0
        %524 = vmatpush1.bf16.msra.mxu0 0
        %525 = vmatprep.subr.bf16.mxu0 0
        %526 = vmatpush1.bf16.msra.mxu0 0
        %527 = vmatprep.subr.bf16.mxu0 0
        %528 = vmatpush1.bf16.msra.mxu0 0
        %529 = vmatprep.subr.bf16.mxu0 0
        %530 = vmatpush1.bf16.msra.mxu0 0
        %531 = vmatprep.mubr.bf16.mxu0 0
        %532 = vmatmul.mubr.bf16.gmra.mrb[0].mxu0 %v493
        %v533 = vpop.f32.mrb[0].mxu0
        %v534 = vadd.f32 0.0, %v533
        %v535 = vpop.f32.mrb[0].mxu0
        %v536 = vpop.f32.mrb[0].mxu0
        %v537 = vpop.f32.mrb[0].mxu0
        %538 = vdwg.mxu0
        %s539 = scalar_lea.vmem %s322, 4 [#allocation4]
        %v540 = vld [vmem:[%s539] sm:$0xf]
        %s541 = scalar_lea.vmem %s331, 4 [#allocation7]
        %v542 = vld [vmem:[%s541] sm:$0xf]
        %v544 = vsel %vm418, %v540, 0
        %v547 = vsel %vm418, %v542, 0
        %549 = vmatprep.subr.bf16.mxu0 0
        %550 = vmatpush1.bf16.xpose.msra.mxu0 %v547
        %551 = vmatprep.subr.bf16.mxu0 0
        %552 = vmatpush1.bf16.xpose.msra.mxu0 0
        %553 = vmatprep.subr.bf16.mxu0 0
        %554 = vmatpush1.bf16.xpose.msra.mxu0 0
        %555 = vmatprep.subr.bf16.mxu0 0
        %556 = vmatpush1.bf16.xpose.msra.mxu0 0
        %557 = vmatprep.subr.bf16.mxu0 0
        %558 = vmatpush1.bf16.xpose.msra.mxu0 0
        %559 = vmatprep.subr.bf16.mxu0 0
        %560 = vmatpush1.bf16.xpose.msra.mxu0 0
        %561 = vmatprep.subr.bf16.mxu0 0
        %562 = vmatpush1.bf16.xpose.msra.mxu0 0
        %563 = vmatprep.subr.bf16.mxu0 0
        %564 = vmatpush1.bf16.xpose.msra.mxu0 0
        %565 = vmatprep.subr.bf16.mxu0 0
        %566 = vmatpush1.bf16.xpose.msra.mxu0 0
        %567 = vmatprep.subr.bf16.mxu0 0
        %568 = vmatpush1.bf16.xpose.msra.mxu0 0
        %569 = vmatprep.subr.bf16.mxu0 0
        %570 = vmatpush1.bf16.xpose.msra.mxu0 0
        %571 = vmatprep.subr.bf16.mxu0 0
        %572 = vmatpush1.bf16.xpose.msra.mxu0 0
        %573 = vmatprep.subr.bf16.mxu0 0
        %574 = vmatpush1.bf16.xpose.msra.mxu0 0
        %575 = vmatprep.subr.bf16.mxu0 0
        %576 = vmatpush1.bf16.xpose.msra.mxu0 0
        %577 = vmatprep.subr.bf16.mxu0 0
        %578 = vmatpush1.bf16.xpose.msra.mxu0 0
        %579 = vmatprep.subr.bf16.mxu0 0
        %580 = vmatpush1.bf16.xpose.msra.mxu0 0
        %581 = vmatprep.mubr.bf16.mxu0 0
        %582 = vmatmul.mubr.bf16.gmra.mrb[0].mxu0 %v544
        %v583 = vpop.f32.mrb[0].mxu0
        %v584 = vadd.f32 0.0, %v583
        %v585 = vpop.f32.mrb[0].mxu0
        %v586 = vpop.f32.mrb[0].mxu0
        %v587 = vpop.f32.mrb[0].mxu0
        %588 = vdwg.mxu0
        %v589 = vmax.f32 %v584, -10.0
        %v590 = vmin.f32 %v589, 10.0
        %v591 = vadd.f32 %v590, %v470
        %v592 = vadd.f32 %v591, %v477
        %v593 = vmul.f32 %v592, 1.442695
        %v594 = vpow.pop %v593
        %s595 = scalar_lea.vmem [#allocation3], 8
        %v596 = vld [vmem:[%s595] sm:$0xff]
        %v597 = vsel %vm483, %v594, 0.0
        %598 = vadd.xlane.f32.xlu0 %v597
        %v599 = vpop.xlane.xlu0 %598
        %v600 = vadd.f32 %v596, %v599
        %601 = vst.msk [vmem:[%s595] sm:$0xff] %vm488, %v600
        %v602 = vpack.c.bf16 %v594, %v594
        %s603 = scalar_lea.vmem %s340, 4 [#allocation9]
        %v604 = vld [vmem:[%s603] sm:$0xf]
        %v606 = vsel %vm483, %v602, 0
        %v609 = vsel %vm495, %v604, 0
        %611 = vmatprep.subr.bf16.mxu0 0
        %612 = vmatpush1.bf16.msra.mxu0 %v609
        %613 = vmatprep.subr.bf16.mxu0 0
        %614 = vmatpush1.bf16.msra.mxu0 0
        %615 = vmatprep.subr.bf16.mxu0 0
        %616 = vmatpush1.bf16.msra.mxu0 0
        %617 = vmatprep.subr.bf16.mxu0 0
        %618 = vmatpush1.bf16.msra.mxu0 0
        %619 = vmatprep.subr.bf16.mxu0 0
        %620 = vmatpush1.bf16.msra.mxu0 0
        %621 = vmatprep.subr.bf16.mxu0 0
        %622 = vmatpush1.bf16.msra.mxu0 0
        %623 = vmatprep.subr.bf16.mxu0 0
        %624 = vmatpush1.bf16.msra.mxu0 0
        %625 = vmatprep.subr.bf16.mxu0 0
        %626 = vmatpush1.bf16.msra.mxu0 0
        %627 = vmatprep.subr.bf16.mxu0 0
        %628 = vmatpush1.bf16.msra.mxu0 0
        %629 = vmatprep.subr.bf16.mxu0 0
        %630 = vmatpush1.bf16.msra.mxu0 0
        %631 = vmatprep.subr.bf16.mxu0 0
        %632 = vmatpush1.bf16.msra.mxu0 0
        %633 = vmatprep.subr.bf16.mxu0 0
        %634 = vmatpush1.bf16.msra.mxu0 0
        %635 = vmatprep.subr.bf16.mxu0 0
        %636 = vmatpush1.bf16.msra.mxu0 0
        %637 = vmatprep.subr.bf16.mxu0 0
        %638 = vmatpush1.bf16.msra.mxu0 0
        %639 = vmatprep.subr.bf16.mxu0 0
        %640 = vmatpush1.bf16.msra.mxu0 0
        %641 = vmatprep.subr.bf16.mxu0 0
        %642 = vmatpush1.bf16.msra.mxu0 0
        %643 = vmatprep.mubr.bf16.mxu0 0
        %644 = vmatmul.mubr.bf16.gmra.mrb[0].mxu0 %v606
        %v645 = vpop.f32.mrb[0].mxu0
        %v646 = vadd.f32 0.0, %v645
        %v647 = vpop.f32.mrb[0].mxu0
        %v648 = vpop.f32.mrb[0].mxu0
        %v649 = vpop.f32.mrb[0].mxu0
        %650 = vdwg.mxu0
        %s651 = scalar_lea.vmem %s322, 8 [#allocation4]
        %v652 = vld [vmem:[%s651] sm:$0xf]
        %s653 = scalar_lea.vmem %s331, 8 [#allocation7]
        %v654 = vld [vmem:[%s653] sm:$0xf]
        %v656 = vsel %vm418, %v652, 0
        %v659 = vsel %vm418, %v654, 0
        %661 = vmatprep.subr.bf16.mxu0 0
        %662 = vmatpush1.bf16.xpose.msra.mxu0 %v659
        %663 = vmatprep.subr.bf16.mxu0 0
        %664 = vmatpush1.bf16.xpose.msra.mxu0 0
        %665 = vmatprep.subr.bf16.mxu0 0
        %666 = vmatpush1.bf16.xpose.msra.mxu0 0
        %667 = vmatprep.subr.bf16.mxu0 0
        %668 = vmatpush1.bf16.xpose.msra.mxu0 0
        %669 = vmatprep.subr.bf16.mxu0 0
        %670 = vmatpush1.bf16.xpose.msra.mxu0 0
        %671 = vmatprep.subr.bf16.mxu0 0
        %672 = vmatpush1.bf16.xpose.msra.mxu0 0
        %673 = vmatprep.subr.bf16.mxu0 0
        %674 = vmatpush1.bf16.xpose.msra.mxu0 0
        %675 = vmatprep.subr.bf16.mxu0 0
        %676 = vmatpush1.bf16.xpose.msra.mxu0 0
        %677 = vmatprep.subr.bf16.mxu0 0
        %678 = vmatpush1.bf16.xpose.msra.mxu0 0
        %679 = vmatprep.subr.bf16.mxu0 0
        %680 = vmatpush1.bf16.xpose.msra.mxu0 0
        %681 = vmatprep.subr.bf16.mxu0 0
        %682 = vmatpush1.bf16.xpose.msra.mxu0 0
        %683 = vmatprep.subr.bf16.mxu0 0
        %684 = vmatpush1.bf16.xpose.msra.mxu0 0
        %685 = vmatprep.subr.bf16.mxu0 0
        %686 = vmatpush1.bf16.xpose.msra.mxu0 0
        %687 = vmatprep.subr.bf16.mxu0 0
        %688 = vmatpush1.bf16.xpose.msra.mxu0 0
        %689 = vmatprep.subr.bf16.mxu0 0
        %690 = vmatpush1.bf16.xpose.msra.mxu0 0
        %691 = vmatprep.subr.bf16.mxu0 0
        %692 = vmatpush1.bf16.xpose.msra.mxu0 0
        %693 = vmatprep.mubr.bf16.mxu0 0
        %694 = vmatmul.mubr.bf16.gmra.mrb[0].mxu0 %v656
        %v695 = vpop.f32.mrb[0].mxu0
        %v696 = vadd.f32 0.0, %v695
        %v697 = vpop.f32.mrb[0].mxu0
        %v698 = vpop.f32.mrb[0].mxu0
        %v699 = vpop.f32.mrb[0].mxu0
        %700 = vdwg.mxu0
        %v701 = vmax.f32 %v696, -10.0
        %v702 = vmin.f32 %v701, 10.0
        %v703 = vadd.f32 %v702, %v470
        %v704 = vadd.f32 %v703, %v477
        %v705 = vmul.f32 %v704, 1.442695
        %v706 = vpow.pop %v705
        %s707 = scalar_lea.vmem [#allocation3], 16
        %v708 = vld [vmem:[%s707] sm:$0xff]
        %v709 = vsel %vm483, %v706, 0.0
        %710 = vadd.xlane.f32.xlu0 %v709
        %v711 = vpop.xlane.xlu0 %710
        %v712 = vadd.f32 %v708, %v711
        %713 = vst.msk [vmem:[%s707] sm:$0xff] %vm488, %v712
        %v714 = vpack.c.bf16 %v706, %v706
        %s715 = scalar_lea.vmem %s340, 8 [#allocation9]
        %v716 = vld [vmem:[%s715] sm:$0xf]
        %v718 = vsel %vm483, %v714, 0
        %v721 = vsel %vm495, %v716, 0
        %723 = vmatprep.subr.bf16.mxu0 0
        %724 = vmatpush1.bf16.msra.mxu0 %v721
        %725 = vmatprep.subr.bf16.mxu0 0
        %726 = vmatpush1.bf16.msra.mxu0 0
        %727 = vmatprep.subr.bf16.mxu0 0
        %728 = vmatpush1.bf16.msra.mxu0 0
        %729 = vmatprep.subr.bf16.mxu0 0
        %730 = vmatpush1.bf16.msra.mxu0 0
        %731 = vmatprep.subr.bf16.mxu0 0
        %732 = vmatpush1.bf16.msra.mxu0 0
        %733 = vmatprep.subr.bf16.mxu0 0
        %734 = vmatpush1.bf16.msra.mxu0 0
        %735 = vmatprep.subr.bf16.mxu0 0
        %736 = vmatpush1.bf16.msra.mxu0 0
        %737 = vmatprep.subr.bf16.mxu0 0
        %738 = vmatpush1.bf16.msra.mxu0 0
        %739 = vmatprep.subr.bf16.mxu0 0
        %740 = vmatpush1.bf16.msra.mxu0 0
        %741 = vmatprep.subr.bf16.mxu0 0
        %742 = vmatpush1.bf16.msra.mxu0 0
        %743 = vmatprep.subr.bf16.mxu0 0
        %744 = vmatpush1.bf16.msra.mxu0 0
        %745 = vmatprep.subr.bf16.mxu0 0
        %746 = vmatpush1.bf16.msra.mxu0 0
        %747 = vmatprep.subr.bf16.mxu0 0
        %748 = vmatpush1.bf16.msra.mxu0 0
        %749 = vmatprep.subr.bf16.mxu0 0
        %750 = vmatpush1.bf16.msra.mxu0 0
        %751 = vmatprep.subr.bf16.mxu0 0
        %752 = vmatpush1.bf16.msra.mxu0 0
        %753 = vmatprep.subr.bf16.mxu0 0
        %754 = vmatpush1.bf16.msra.mxu0 0
        %755 = vmatprep.mubr.bf16.mxu0 0
        %756 = vmatmul.mubr.bf16.gmra.mrb[0].mxu0 %v718
        %v757 = vpop.f32.mrb[0].mxu0
        %v758 = vadd.f32 0.0, %v757
        %v759 = vpop.f32.mrb[0].mxu0
        %v760 = vpop.f32.mrb[0].mxu0
        %v761 = vpop.f32.mrb[0].mxu0
        %762 = vdwg.mxu0
        %s763 = scalar_lea.vmem %s322, 12 [#allocation4]
        %v764 = vld [vmem:[%s763] sm:$0xf]
        %s765 = scalar_lea.vmem %s331, 12 [#allocation7]
        %v766 = vld [vmem:[%s765] sm:$0xf]
        %v768 = vsel %vm418, %v764, 0
        %v771 = vsel %vm418, %v766, 0
        %773 = vmatprep.subr.bf16.mxu0 0
        %774 = vmatpush1.bf16.xpose.msra.mxu0 %v771
        %775 = vmatprep.subr.bf16.mxu0 0
        %776 = vmatpush1.bf16.xpose.msra.mxu0 0
        %777 = vmatprep.subr.bf16.mxu0 0
        %778 = vmatpush1.bf16.xpose.msra.mxu0 0
        %779 = vmatprep.subr.bf16.mxu0 0
        %780 = vmatpush1.bf16.xpose.msra.mxu0 0
        %781 = vmatprep.subr.bf16.mxu0 0
        %782 = vmatpush1.bf16.xpose.msra.mxu0 0
        %783 = vmatprep.subr.bf16.mxu0 0
        %784 = vmatpush1.bf16.xpose.msra.mxu0 0
        %785 = vmatprep.subr.bf16.mxu0 0
        %786 = vmatpush1.bf16.xpose.msra.mxu0 0
        %787 = vmatprep.subr.bf16.mxu0 0
        %788 = vmatpush1.bf16.xpose.msra.mxu0 0
        %789 = vmatprep.subr.bf16.mxu0 0
        %790 = vmatpush1.bf16.xpose.msra.mxu0 0
        %791 = vmatprep.subr.bf16.mxu0 0
        %792 = vmatpush1.bf16.xpose.msra.mxu0 0
        %793 = vmatprep.subr.bf16.mxu0 0
        %794 = vmatpush1.bf16.xpose.msra.mxu0 0
        %795 = vmatprep.subr.bf16.mxu0 0
        %796 = vmatpush1.bf16.xpose.msra.mxu0 0
        %797 = vmatprep.subr.bf16.mxu0 0
        %798 = vmatpush1.bf16.xpose.msra.mxu0 0
        %799 = vmatprep.subr.bf16.mxu0 0
        %800 = vmatpush1.bf16.xpose.msra.mxu0 0
        %801 = vmatprep.subr.bf16.mxu0 0
        %802 = vmatpush1.bf16.xpose.msra.mxu0 0
        %803 = vmatprep.subr.bf16.mxu0 0
        %804 = vmatpush1.bf16.xpose.msra.mxu0 0
        %805 = vmatprep.mubr.bf16.mxu0 0
        %806 = vmatmul.mubr.bf16.gmra.mrb[0].mxu0 %v768
        %v807 = vpop.f32.mrb[0].mxu0
        %v808 = vadd.f32 0.0, %v807
        %v809 = vpop.f32.mrb[0].mxu0
        %v810 = vpop.f32.mrb[0].mxu0
        %v811 = vpop.f32.mrb[0].mxu0
        %812 = vdwg.mxu0
        %v813 = vmax.f32 %v808, -10.0
        %v814 = vmin.f32 %v813, 10.0
        %v815 = vadd.f32 %v814, %v470
        %v816 = vadd.f32 %v815, %v477
        %v817 = vmul.f32 %v816, 1.442695
        %v818 = vpow.pop %v817
        %s819 = scalar_lea.vmem [#allocation3], 24
        %v820 = vld [vmem:[%s819] sm:$0xff]
        %v821 = vsel %vm483, %v818, 0.0
        %822 = vadd.xlane.f32.xlu0 %v821
        %v823 = vpop.xlane.xlu0 %822
        %v824 = vadd.f32 %v820, %v823
        %825 = vst.msk [vmem:[%s819] sm:$0xff] %vm488, %v824
        %v826 = vpack.c.bf16 %v818, %v818
        %s827 = scalar_lea.vmem %s340, 12 [#allocation9]
        %v828 = vld [vmem:[%s827] sm:$0xf]
        %v830 = vsel %vm483, %v826, 0
        %v833 = vsel %vm495, %v828, 0
        %835 = vmatprep.subr.bf16.mxu0 0
        %836 = vmatpush1.bf16.msra.mxu0 %v833
        %837 = vmatprep.subr.bf16.mxu0 0
        %838 = vmatpush1.bf16.msra.mxu0 0
        %839 = vmatprep.subr.bf16.mxu0 0
        %840 = vmatpush1.bf16.msra.mxu0 0
        %841 = vmatprep.subr.bf16.mxu0 0
        %842 = vmatpush1.bf16.msra.mxu0 0
        %843 = vmatprep.subr.bf16.mxu0 0
        %844 = vmatpush1.bf16.msra.mxu0 0
        %845 = vmatprep.subr.bf16.mxu0 0
        %846 = vmatpush1.bf16.msra.mxu0 0
        %847 = vmatprep.subr.bf16.mxu0 0
        %848 = vmatpush1.bf16.msra.mxu0 0
        %849 = vmatprep.subr.bf16.mxu0 0
        %850 = vmatpush1.bf16.msra.mxu0 0
        %851 = vmatprep.subr.bf16.mxu0 0
        %852 = vmatpush1.bf16.msra.mxu0 0
        %853 = vmatprep.subr.bf16.mxu0 0
        %854 = vmatpush1.bf16.msra.mxu0 0
        %855 = vmatprep.subr.bf16.mxu0 0
        %856 = vmatpush1.bf16.msra.mxu0 0
        %857 = vmatprep.subr.bf16.mxu0 0
        %858 = vmatpush1.bf16.msra.mxu0 0
        %859 = vmatprep.subr.bf16.mxu0 0
        %860 = vmatpush1.bf16.msra.mxu0 0
        %861 = vmatprep.subr.bf16.mxu0 0
        %862 = vmatpush1.bf16.msra.mxu0 0
        %863 = vmatprep.subr.bf16.mxu0 0
        %864 = vmatpush1.bf16.msra.mxu0 0
        %865 = vmatprep.subr.bf16.mxu0 0
        %866 = vmatpush1.bf16.msra.mxu0 0
        %867 = vmatprep.mubr.bf16.mxu0 0
        %868 = vmatmul.mubr.bf16.gmra.mrb[0].mxu0 %v830
        %v869 = vpop.f32.mrb[0].mxu0
        %v870 = vadd.f32 0.0, %v869
        %v871 = vpop.f32.mrb[0].mxu0
        %v872 = vpop.f32.mrb[0].mxu0
        %v873 = vpop.f32.mrb[0].mxu0
        %874 = vdwg.mxu0
        %v875 = vld [vmem:[#allocation2] sm:$0xff]
        %877 = vrot.lane.b32.xlu0 %v646, 32
        %v878 = vpop.permute.xlu0 %877
        %881 = vrot.lane.b32.xlu0 %v758, 64
        %v882 = vpop.permute.xlu0 %881
        %885 = vrot.lane.b32.xlu0 %v870, 96
        %v886 = vpop.permute.xlu0 %885
        %v888 = vsel %vm418, %v534, %v878
        %vm889 = vcmask 523264
        %v890 = vsel %vm889, %v888, %v882
        %vm891 = vcmask 785408
        %v892 = vsel %vm891, %v890, %v886
        %v893 = vadd.f32 %v875, %v892
        %894 = vst [vmem:[#allocation2] sm:$0xff] %v893
        // Predicated region
        $region57: #{tpu_custom_call.1} parent=39 // pred_check
          %p895 = pneg %p404
        $region58: #{tpu_custom_call.1} parent=39 // pred_check_branch
          %897 = sbr.rel (%p895) target = $region60
        $region59: #{tpu_custom_call.1} parent=39 // pred_region
          %v898 = vld [vmem:[#allocation3] sm:$0xff]
          %v899 = vadd.f32 %v898, 1e-05
          %v900 = vrcp.pop %v899
          %v901 = vld [vmem:[#allocation2] sm:$0xff]
          %903 = vset.pattern.permute.xlu0 0
          %904 = vperm.xlu0 %903, %v900
          %v905 = vpop.permute.xlu0 %904
          %v907 = vmul.f32 %v901, %v905
          %v908 = vld [vmem:[%s595] sm:$0xff]
          %v909 = vadd.f32 %v908, 1e-05
          %v910 = vrcp.pop %v909
          %912 = vset.pattern.permute.xlu0 0
          %913 = vperm.xlu0 %912, %v910
          %v914 = vpop.permute.xlu0 %913
          %v916 = vmul.f32 %v901, %v914
          %v917 = vld [vmem:[%s707] sm:$0xff]
          %v918 = vadd.f32 %v917, 1e-05
          %v919 = vrcp.pop %v918
          %921 = vset.pattern.permute.xlu0 0
          %922 = vperm.xlu0 %921, %v919
          %v923 = vpop.permute.xlu0 %922
          %v925 = vmul.f32 %v901, %v923
          %v926 = vld [vmem:[%s819] sm:$0xff]
          %v927 = vadd.f32 %v926, 1e-05
          %v928 = vrcp.pop %v927
          %930 = vset.pattern.permute.xlu0 0
          %931 = vperm.xlu0 %930, %v928
          %v932 = vpop.permute.xlu0 %931
          %v934 = vmul.f32 %v901, %v932
          %v935 = vsel %vm418, %v907, %v916
          %v936 = vsel %vm889, %v935, %v925
          %v937 = vsel %vm891, %v936, %v934
          %v938 = vpack.c.bf16 %v937, %v937
          %939 = vst [vmem:[%s389] sm:$0xf] %v938
        $region60: #{tpu_custom_call.1} parent=39 // pred_fallthru
          _
        %s940 = sand.u32 %s194, 1
        %s941 = scalar_lea.sflag [#allocation6], %s940
        %s942 = sand.u32 %s194, 1
        %s943 = smul.addr %s942, 4
        %s944 = scalar_lea.vmem [#allocation10], %s943
        // Predicated region
        $region61: #{tpu_custom_call.1} parent=39 // pred_check
          %p945 = pneg %p204
        $region62: #{tpu_custom_call.1} parent=39 // pred_check_branch
          %947 = sbr.rel (%p945) target = $region64
        $region63: #{tpu_custom_call.1} parent=39 // pred_region
          %s949 = ssub.s32 64, 64
          %950 = vsyncadd %s941, %s949
          %s951 = sadd.s32 %s31, %s30
          %s952 = smul.addr %s951, 64
          %s953 = scalar_lea.hbm %s5, %s952
          %s955 = sshll.u32 %s944, 4
          %s956 = int_to_ptr.vmem [resolvable:$true] %s955
          %958 = dma.vmem_to_hbm [thread:$0]  %s956, 64, %s953, %s941
        $region64: #{tpu_custom_call.1} parent=39 // pred_fallthru
          _
      $region40: #{tpu_custom_call.1} parent=5 // pred_fallthru
        _
      %p959 = scmp.le.s32.totalorder 2, %s20
      // Predicated region
      $region65: #{tpu_custom_call.1} parent=5 // pred_check
        %p960 = pneg %p959
      $region66: #{tpu_custom_call.1} parent=5 // pred_check_branch
        %962 = sbr.rel (%p960) target = $region68
      $region67: #{tpu_custom_call.1} parent=5 // pred_region
        %s963 = ssub.s32 %s20, 2
        // Predicated region
        $region69: #{tpu_custom_call.1} parent=67 // pred_check
          %p964 = pneg %p210
        $region70: #{tpu_custom_call.1} parent=67 // pred_check_branch
          %966 = sbr.rel (%p964) target = $region72
        $region71: #{tpu_custom_call.1} parent=67 // pred_region
          %s967 = sand.u32 %s195, 1
          %s968 = scalar_lea.sflag [#allocation6], %s967
          %s969 = sand.u32 %s195, 1
          %s970 = smul.addr %s969, 4
          %s971 = scalar_lea.vmem [#allocation10], %s970
          %972 = dma.done %s968, 64
        $region72: #{tpu_custom_call.1} parent=67 // pred_fallthru
          _
      $region68: #{tpu_custom_call.1} parent=5 // pred_fallthru
        _
    $region6: #{tpu_custom_call.1} parent=1 // loop_footer
      %s24 = sadd.s32 1, %s20
    $region7: #{tpu_custom_call.1} parent=1 // loop_footer_branch
      %19 = sbr.rel target = $region3
    $region8: #{tpu_custom_call.1} parent=1 // loop_exit
      _
    %973 = vsyncpa [#allocation5], 1
    %s974 = scalar_lea.sflag [#allocation5], 1
    %975 = vsyncpa %s974, 1
    %976 = vsyncpa [#allocation8], 1
    %s977 = scalar_lea.sflag [#allocation8], 1
    %978 = vsyncpa %s977, 1
    %979 = vsyncpa [#allocation6], 1
    %s980 = scalar_lea.sflag [#allocation6], 1
    %981 = vsyncpa %s980, 1

</llo_original>
